<compile_context>
chip_gen: v6e
topology: v6e:2x2x1
jax: 0.10.0
libtpu: 0.0.40
codegen_flags: <defaults>
</compile_context>

<pallas_src>
import functools

import jax
import jax.numpy as jnp
import numpy as np
from jax.experimental import pallas as pl
from jax.experimental.pallas import tpu as pltpu


def _attn_readout_kernel(feat_ref, last_ref, mask_ref, bns_ref, bnb_ref,
                         wx_ref, wl_ref, bv_ref, we_ref, bm_ref,
                         score_ref, packed_ref,
                         *, tb, seq_len, hidden_dim, out_dim):
    L, H, O = seq_len, hidden_dim, out_dim

    mask = mask_ref[...]                                        # (TB*L, 1) f32
    # BatchNorm1d(session_len), eval mode: folded per-position affine, then mask.
    x = (feat_ref[...] * bns_ref[...] + bnb_ref[...]) * mask    # (TB*L, D)

    # Fused MXU passes: bf16 operands, f32 accumulation.
    #   wx = [W_u | W_out | W_out @ W_mlp_rst]   -> (TB*L, H + O + H)
    #   wl = [W_v | W_mlp_short]                 -> (TB,   2H)   (one row / session)
    xw = jnp.dot(x.astype(jnp.bfloat16), wx_ref[...],
                 preferred_element_type=jnp.float32)
    lw = jnp.dot(last_ref[...].astype(jnp.bfloat16), wl_ref[...],
                 preferred_element_type=jnp.float32)

    # Attention logits: tanh(feat_u + feat_v) @ W_e, masked, sigmoid.
    feat_u = (xw[:, :H] * mask).reshape(tb, L, H)               # (TB, L, H)
    feat_v = lw[:, :H] + bv_ref[...]                            # (TB, H)
    t = jnp.tanh(feat_u + feat_v[:, None, :]).reshape(tb * L, H)
    e = jnp.dot(t.astype(jnp.bfloat16), we_ref[...],
                preferred_element_type=jnp.float32)             # (TB*L, 2)
    e = jax.nn.sigmoid(e * mask)   # masked rows -> 0 -> sigmoid = 0.5 (matches torch)
    score_ref[...] = e

    # ---- get_long_term: per-session softmax over the second score column ----
    neg = jnp.where(mask > 0.0, 0.0, -1e30)                     # robust mask sentinel
    e0 = (e[:, 1:2] + neg).reshape(tb, L, 1)                    # (TB, L, 1)
    p = jnp.exp(e0 - jnp.max(e0, axis=1, keepdims=True))
    beta = p / jnp.sum(p, axis=1, keepdims=True)                # softmax over L
    w = beta * mask.reshape(tb, L, 1)                           # (TB, L, 1)

    # The weighted pooling commutes with W_out / (W_out @ W_mlp_rst):
    #   rst             = sum_l w_l * (x_l @ W_out)
    #   rst @ W_mlp_rst = sum_l w_l * (x_l @ W_out @ W_mlp_rst)
    xo = xw[:, H:].reshape(tb, L, O + H)
    pooled = jnp.sum(xo * w, axis=1)                            # (TB, O + H)

    packed_ref[:, :O] = pooled[:, :O]                           # rst (long-term repr)
    packed_ref[:, O:] = pooled[:, O:] + lw[:, H:] + bm_ref[...]  # item-level seq repr


def _pick_tb(batch, seq_len):
    # Aim for ~256 rows per tile (MXU-friendly M), keep sublane dims multiples
    # of 8 (or full extent), and prefer >= 2 grid steps so both v7x TensorCores
    # get work under dimension_semantics=("parallel",).
    cap = max(1, 256 // max(seq_len, 1))
    divisors = [d for d in range(1, batch + 1) if batch % d == 0]

    def ok(d):
        rows_ok = (d * seq_len) % 8 == 0 or d == batch
        tb_ok = d % 8 == 0 or d == batch
        return rows_ok and tb_ok

    valid = [d for d in divisors if ok(d)] or [batch]
    pref = [d for d in valid if d <= cap and batch // d >= 2]
    pool = pref or [d for d in valid if d <= cap] or valid
    return max(pool)


def attn_readout(feat, last_nodes, mask, params, *, tb=None):
    B, L, D = feat.shape
    H = params["wu"].shape[1]
    O = params["wout"].shape[1]

    if tb is None:
        tb = _pick_tb(B, L)
    assert B % tb == 0
    grid = (B // tb,)
    rows = tb * L

    # Flatten batch into the matmul M dimension (D stays on the lane axis).
    feat2 = feat.reshape(B * L, D)
    mask2 = mask.reshape(B * L, 1)
    last2 = last_nodes.reshape(B, D)                            # one row per session

    # Per-position BN affine, replicated across the TB sessions of one tile.
    bns = jnp.tile(params["bn_scale"], (tb, 1))                 # (TB*L, 1)
    bnb = jnp.tile(params["bn_shift"], (tb, 1))

    bf16 = jnp.bfloat16
    wx = jnp.concatenate(
        [params["wu"], params["wout"], params["wout"] @ params["wmlp_rst"]],
        axis=1).astype(bf16)                                    # (D, H + O + H)
    wl = jnp.concatenate([params["wv"], params["wmlp_short"]],
                         axis=1).astype(bf16)                   # (D, 2H)
    we = params["we"].astype(bf16)                              # (H, 2)
    bv = params["bv"]                                           # (1, H)
    bm = params["bmlp"]                                         # (1, H)

    kernel = functools.partial(_attn_readout_kernel, tb=tb, seq_len=L,
                               hidden_dim=H, out_dim=O)

    in_specs = [
        pl.BlockSpec((rows, D), lambda g: (g, 0)),              # feat (flattened)
        pl.BlockSpec((tb, D), lambda g: (g, 0)),                # last nodes (per session)
        pl.BlockSpec((rows, 1), lambda g: (g, 0)),              # mask
        pl.BlockSpec((rows, 1), lambda g: (0, 0)),              # bn scale
        pl.BlockSpec((rows, 1), lambda g: (0, 0)),              # bn shift
        pl.BlockSpec((D, H + O + H), lambda g: (0, 0)),         # fused feat-side weights
        pl.BlockSpec((D, 2 * H), lambda g: (0, 0)),             # fused last-side weights
        pl.BlockSpec((1, H), lambda g: (0, 0)),                 # fc_v bias
        pl.BlockSpec((H, 2), lambda g: (0, 0)),                 # fc_e weight
        pl.BlockSpec((1, H), lambda g: (0, 0)),                 # mlp_n_ls bias
    ]
    out_specs = [
        pl.BlockSpec((rows, 2), lambda g: (g, 0)),              # score (flattened)
        pl.BlockSpec((tb, O + H), lambda g: (g, 0)),            # [rst | item] packed
    ]
    out_shape = [
        jax.ShapeDtypeStruct((B * L, 2), jnp.float32),
        jax.ShapeDtypeStruct((B, O + H), jnp.float32),
    ]

    flops = (2 * B * L * D * (H + O + H) + 2 * B * D * (2 * H)
             + 2 * B * L * H * 2)
    transcendentals = B * L * (H + 3)
    bytes_accessed = (
        (feat2.size + last2.size + mask2.size + bns.size + bnb.size) * 4
        + (wx.size + wl.size + we.size) * 2
        + (bv.size + bm.size) * 4
        + (B * L * 2 + B * (O + H)) * 4)

    score_flat, packed = pl.pallas_call(
        kernel,
        grid=grid,
        in_specs=in_specs,
        out_specs=out_specs,
        out_shape=out_shape,
        compiler_params=pltpu.CompilerParams(
            dimension_semantics=("parallel",)),
        cost_estimate=pl.CostEstimate(
            flops=flops, transcendentals=transcendentals,
            bytes_accessed=bytes_accessed),
    )(feat2, last2, mask2, bns, bnb, wx, wl, bv, we, bm)

    score = score_flat.reshape(B, L, 2)
    rst = packed[:, :O]
    item = packed[:, O:]
    return score, rst, item


def reference(feat, last_nodes, mask, p):
    """Pure-JAX f32 reference mirroring the PyTorch forward."""
    x = feat * p["bn_scale"][None] + p["bn_shift"][None]
    x = x * mask
    x = x * mask
    feat_u = (x @ p["wu"]) * mask
    feat_v = last_nodes @ p["wv"] + p["bv"][None]
    e = (jnp.tanh(feat_u + feat_v) @ p["we"]) * mask
    e = jax.nn.sigmoid(e)
    mask1 = (mask - 1.0) * 2e32
    e0 = e[:, :, 1] + mask1[:, :, 0]
    beta = jax.nn.softmax(e0, axis=1)
    rst = jnp.sum(x * beta[:, :, None] * mask, axis=1)
    rst = rst @ p["wout"]
    short = last_nodes[:, 0, :]
    item = rst @ p["wmlp_rst"] + short @ p["wmlp_short"] + p["bmlp"]
    return e, rst, item


if __name__ == "__main__":
    key = jax.random.PRNGKey(0)
    B, L, D, H = 32, 8, 32, 16      # batch, session_len, input_dim, hidden_dim
    O = H                           # output_dim == hidden_dim (fc_out is active)

    keys = jax.random.split(key, 16)
    feat = jax.random.normal(keys[0], (B, L, D), jnp.float32)
    last_nodes = jax.random.normal(keys[1], (B, 1, D), jnp.float32)
    lengths = jax.random.randint(keys[14], (B,), 1, L + 1)
    mask = (jnp.arange(L)[None, :] < lengths[:, None]).astype(jnp.float32)[:, :, None]

    # Deterministic synthetic parameters (BatchNorm in eval mode, folded).
    scale = 0.2
    eps = 1e-5
    gamma = 1.0 + 0.1 * jax.random.normal(keys[2], (L,), jnp.float32)
    beta_bn = 0.1 * jax.random.normal(keys[3], (L,), jnp.float32)
    run_mean = 0.1 * jax.random.normal(keys[4], (L,), jnp.float32)
    run_var = jax.random.uniform(keys[5], (L,), jnp.float32, 0.5, 1.5)
    bn_scale = (gamma / jnp.sqrt(run_var + eps)).reshape(L, 1)
    bn_shift = (beta_bn - run_mean * gamma / jnp.sqrt(run_var + eps)).reshape(L, 1)

    params = dict(
        bn_scale=bn_scale,
        bn_shift=bn_shift,
        wu=scale * jax.random.normal(keys[6], (D, H), jnp.float32),
        wv=scale * jax.random.normal(keys[7], (D, H), jnp.float32),
        bv=scale * jax.random.normal(keys[8], (1, H), jnp.float32),
        we=scale * jax.random.normal(keys[9], (H, 2), jnp.float32),
        wout=scale * jax.random.normal(keys[10], (D, O), jnp.float32),
        wmlp_rst=scale * jax.random.normal(keys[11], (O, H), jnp.float32),
        wmlp_short=scale * jax.random.normal(keys[12], (D, H), jnp.float32),
        bmlp=scale * jax.random.normal(keys[13], (1, H), jnp.float32),
    )

    score, rst, item = jax.block_until_ready(
        jax.jit(attn_readout)(feat, last_nodes, mask, params))

    score_r, rst_r, item_r = reference(feat, last_nodes, mask, params)
    # bf16 MXU operands with f32 accumulation -> ~1e-2 tolerance vs f32 reference.
    assert np.allclose(np.asarray(score), np.asarray(score_r), atol=1e-2, rtol=1e-2)
    assert np.allclose(np.asarray(rst), np.asarray(rst_r), atol=1e-2, rtol=1e-2)
    assert np.allclose(np.asarray(item), np.asarray(item_r), atol=1e-2, rtol=1e-2)
    print("KERNEL_OK")
</pallas_src>

<mosaic_0001>
module attributes {stable_mosaic.version = 11 : i64} {
  func.func @_attn_readout_kernel(%arg0: i32, %arg1: memref<128x32xf32, #tpu.memory_space<vmem>>, %arg2: memref<16x32xf32, #tpu.memory_space<vmem>>, %arg3: memref<128x1xf32, #tpu.memory_space<vmem>>, %arg4: memref<128x1xf32, #tpu.memory_space<vmem>>, %arg5: memref<128x1xf32, #tpu.memory_space<vmem>>, %arg6: memref<32x48xbf16, #tpu.memory_space<vmem>>, %arg7: memref<32x32xbf16, #tpu.memory_space<vmem>>, %arg8: memref<1x16xf32, #tpu.memory_space<vmem>>, %arg9: memref<16x2xbf16, #tpu.memory_space<vmem>>, %arg10: memref<1x16xf32, #tpu.memory_space<vmem>>, %arg11: memref<128x2xf32, #tpu.memory_space<vmem>>, %arg12: memref<16x32xf32, #tpu.memory_space<vmem>>) attributes {dimension_semantics = [#tpu.dimension_semantics<parallel>], iteration_bounds = array<i64: 2>, scalar_prefetch = 0 : i64, scratch_operands = 0 : i64, tpu.core_type = #tpu.core_type<tc>, window_params = [{transform_indices = @transform_0, window_bounds = array<i64: 128, 32>}, {transform_indices = @transform_1, window_bounds = array<i64: 16, 32>}, {transform_indices = @transform_2, window_bounds = array<i64: 128, 1>}, {pipeline_mode = #tpu.pipeline_mode<synchronous>, transform_indices = @transform_3, window_bounds = array<i64: 128, 1>}, {pipeline_mode = #tpu.pipeline_mode<synchronous>, transform_indices = @transform_4, window_bounds = array<i64: 128, 1>}, {pipeline_mode = #tpu.pipeline_mode<synchronous>, transform_indices = @transform_5, window_bounds = array<i64: 32, 48>}, {pipeline_mode = #tpu.pipeline_mode<synchronous>, transform_indices = @transform_6, window_bounds = array<i64: 32, 32>}, {pipeline_mode = #tpu.pipeline_mode<synchronous>, transform_indices = @transform_7, window_bounds = array<i64: 1, 16>}, {pipeline_mode = #tpu.pipeline_mode<synchronous>, transform_indices = @transform_8, window_bounds = array<i64: 16, 2>}, {pipeline_mode = #tpu.pipeline_mode<synchronous>, transform_indices = @transform_9, window_bounds = array<i64: 1, 16>}, {transform_indices = @transform_10, window_bounds = array<i64: 128, 2>}, {transform_indices = @transform_11, window_bounds = array<i64: 16, 32>}]} {
    %c0 = arith.constant 0 : index
    %c0_0 = arith.constant 0 : index
    %0 = vector.load %arg3[%c0, %c0_0] : memref<128x1xf32, #tpu.memory_space<vmem>>, vector<128x1xf32>
    %c0_1 = arith.constant 0 : index
    %c0_2 = arith.constant 0 : index
    %1 = vector.load %arg1[%c0_1, %c0_2] : memref<128x32xf32, #tpu.memory_space<vmem>>, vector<128x32xf32>
    %c0_3 = arith.constant 0 : index
    %c0_4 = arith.constant 0 : index
    %2 = vector.load %arg4[%c0_3, %c0_4] : memref<128x1xf32, #tpu.memory_space<vmem>>, vector<128x1xf32>
    %3 = vector.broadcast %2 : vector<128x1xf32> to vector<128x32xf32>
    %4 = arith.mulf %1, %3 : vector<128x32xf32>
    %c0_5 = arith.constant 0 : index
    %c0_6 = arith.constant 0 : index
    %5 = vector.load %arg5[%c0_5, %c0_6] : memref<128x1xf32, #tpu.memory_space<vmem>>, vector<128x1xf32>
    %6 = vector.broadcast %5 : vector<128x1xf32> to vector<128x32xf32>
    %7 = arith.addf %4, %6 : vector<128x32xf32>
    %8 = vector.broadcast %0 : vector<128x1xf32> to vector<128x32xf32>
    %9 = arith.mulf %7, %8 : vector<128x32xf32>
    %10 = arith.truncf %9 : vector<128x32xf32> to vector<128x32xbf16>
    %c0_7 = arith.constant 0 : index
    %c0_8 = arith.constant 0 : index
    %11 = vector.load %arg6[%c0_7, %c0_8] : memref<32x48xbf16, #tpu.memory_space<vmem>>, vector<32x48xbf16>
    %cst = arith.constant dense<0.000000e+00> : vector<128x48xf32>
    %12 = tpu.matmul %10, %11, %cst {dimension_numbers = #tpu.dot_dimension_numbers<[1], [0], [0], [1], [0, 0, 1, 1], [], []>} : vector<128x32xbf16>, vector<32x48xbf16>, vector<128x48xf32> -> vector<128x48xf32>
    %c0_9 = arith.constant 0 : index
    %c0_10 = arith.constant 0 : index
    %13 = vector.load %arg2[%c0_9, %c0_10] : memref<16x32xf32, #tpu.memory_space<vmem>>, vector<16x32xf32>
    %14 = arith.truncf %13 : vector<16x32xf32> to vector<16x32xbf16>
    %c0_11 = arith.constant 0 : index
    %c0_12 = arith.constant 0 : index
    %15 = vector.load %arg7[%c0_11, %c0_12] : memref<32x32xbf16, #tpu.memory_space<vmem>>, vector<32x32xbf16>
    %cst_13 = arith.constant dense<0.000000e+00> : vector<16x32xf32>
    %16 = tpu.matmul %14, %15, %cst_13 {dimension_numbers = #tpu.dot_dimension_numbers<[1], [0], [0], [1], [0, 0, 1, 1], [], []>} : vector<16x32xbf16>, vector<32x32xbf16>, vector<16x32xf32> -> vector<16x32xf32>
    %17 = vector.extract_strided_slice %12 {offsets = [0, 0], sizes = [128, 16], strides = [1, 1]} : vector<128x48xf32> to vector<128x16xf32>
    %18 = vector.broadcast %0 : vector<128x1xf32> to vector<128x16xf32>
    %19 = arith.mulf %17, %18 : vector<128x16xf32>
    %20 = vector.shape_cast %19 : vector<128x16xf32> to vector<16x8x16xf32>
    %21 = vector.extract_strided_slice %16 {offsets = [0, 0], sizes = [16, 16], strides = [1, 1]} : vector<16x32xf32> to vector<16x16xf32>
    %c0_14 = arith.constant 0 : index
    %c0_15 = arith.constant 0 : index
    %22 = vector.load %arg8[%c0_14, %c0_15] : memref<1x16xf32, #tpu.memory_space<vmem>>, vector<1x16xf32>
    %23 = vector.broadcast %22 : vector<1x16xf32> to vector<16x16xf32>
    %24 = arith.addf %21, %23 : vector<16x16xf32>
    %25 = vector.shape_cast %24 : vector<16x16xf32> to vector<16x1x16xf32>
    %26 = vector.broadcast %25 : vector<16x1x16xf32> to vector<16x8x16xf32>
    %27 = arith.addf %20, %26 : vector<16x8x16xf32>
    %28 = math.tanh %27 : vector<16x8x16xf32>
    %29 = vector.shape_cast %28 : vector<16x8x16xf32> to vector<128x16xf32>
    %30 = arith.truncf %29 : vector<128x16xf32> to vector<128x16xbf16>
    %c0_16 = arith.constant 0 : index
    %c0_17 = arith.constant 0 : index
    %31 = vector.load %arg9[%c0_16, %c0_17] : memref<16x2xbf16, #tpu.memory_space<vmem>>, vector<16x2xbf16>
    %cst_18 = arith.constant dense<0.000000e+00> : vector<128x2xf32>
    %32 = tpu.matmul %30, %31, %cst_18 {dimension_numbers = #tpu.dot_dimension_numbers<[1], [0], [0], [1], [0, 0, 1, 1], [], []>} : vector<128x16xbf16>, vector<16x2xbf16>, vector<128x2xf32> -> vector<128x2xf32>
    %33 = vector.broadcast %0 : vector<128x1xf32> to vector<128x2xf32>
    %34 = arith.mulf %32, %33 : vector<128x2xf32>
    %35 = arith.negf %34 : vector<128x2xf32>
    %36 = math.exp %35 : vector<128x2xf32>
    %cst_19 = arith.constant 1.000000e+00 : f32
    %37 = vector.broadcast %cst_19 : f32 to vector<128x2xf32>
    %38 = arith.addf %37, %36 : vector<128x2xf32>
    %39 = arith.divf %37, %38 : vector<128x2xf32>
    %c0_20 = arith.constant 0 : index
    %c0_21 = arith.constant 0 : index
    %40 = vector.load %arg11[%c0_20, %c0_21] : memref<128x2xf32, #tpu.memory_space<vmem>>, vector<128x2xf32>
    tpu.vector_store %arg11[%c0_20, %c0_21], %39 {strides = array<i32>} : memref<128x2xf32, #tpu.memory_space<vmem>>, vector<128x2xf32>,
    %cst_22 = arith.constant 0.000000e+00 : f32
    %41 = vector.broadcast %cst_22 : f32 to vector<128x1xf32>
    %42 = arith.cmpf ogt, %0, %41 : vector<128x1xf32>
    %cst_23 = arith.constant 0.000000e+00 : f32
    %cst_24 = arith.constant -1.000000e+30 : f32
    %43 = vector.broadcast %cst_23 : f32 to vector<128x1xf32>
    %44 = vector.broadcast %cst_24 : f32 to vector<128x1xf32>
    %45 = arith.select %42, %43, %44 : vector<128x1xi1>, vector<128x1xf32>
    %46 = vector.extract_strided_slice %39 {offsets = [0, 1], sizes = [128, 1], strides = [1, 1]} : vector<128x2xf32> to vector<128x1xf32>
    %47 = arith.addf %46, %45 : vector<128x1xf32>
    %48 = vector.shape_cast %47 : vector<128x1xf32> to vector<16x8x1xf32>
    %cst_25 = arith.constant dense<0xFF800000> : vector<16x1xf32>
    %49 = vector.multi_reduction <maximumf>, %48, %cst_25 [1] : vector<16x8x1xf32> to vector<16x1xf32>
    %50 = vector.shape_cast %49 : vector<16x1xf32> to vector<16x1x1xf32>
    %51 = vector.broadcast %50 : vector<16x1x1xf32> to vector<16x8x1xf32>
    %52 = arith.subf %48, %51 : vector<16x8x1xf32>
    %53 = math.exp %52 : vector<16x8x1xf32>
    %cst_26 = arith.constant dense<0.000000e+00> : vector<16x1xf32>
    %54 = vector.multi_reduction <add>, %53, %cst_26 [1] : vector<16x8x1xf32> to vector<16x1xf32>
    %55 = vector.shape_cast %54 : vector<16x1xf32> to vector<16x1x1xf32>
    %56 = vector.broadcast %55 : vector<16x1x1xf32> to vector<16x8x1xf32>
    %57 = arith.divf %53, %56 : vector<16x8x1xf32>
    %58 = vector.shape_cast %0 : vector<128x1xf32> to vector<16x8x1xf32>
    %59 = arith.mulf %57, %58 : vector<16x8x1xf32>
    %60 = vector.extract_strided_slice %12 {offsets = [0, 16], sizes = [128, 32], strides = [1, 1]} : vector<128x48xf32> to vector<128x32xf32>
    %61 = vector.shape_cast %60 : vector<128x32xf32> to vector<16x8x32xf32>
    %62 = vector.broadcast %59 : vector<16x8x1xf32> to vector<16x8x32xf32>
    %63 = arith.mulf %61, %62 : vector<16x8x32xf32>
    %cst_27 = arith.constant dense<0.000000e+00> : vector<16x32xf32>
    %64 = vector.multi_reduction <add>, %63, %cst_27 [1] : vector<16x8x32xf32> to vector<16x32xf32>
    %65 = vector.extract_strided_slice %64 {offsets = [0, 0], sizes = [16, 16], strides = [1, 1]} : vector<16x32xf32> to vector<16x16xf32>
    %c0_28 = arith.constant 0 : index
    %c0_29 = arith.constant 0 : index
    %66 = vector.load %arg12[%c0_28, %c0_29] : memref<16x32xf32, #tpu.memory_space<vmem>>, vector<16x16xf32>
    tpu.vector_store %arg12[%c0_28, %c0_29], %65 {strides = array<i32>} : memref<16x32xf32, #tpu.memory_space<vmem>>, vector<16x16xf32>,
    %67 = vector.extract_strided_slice %64 {offsets = [0, 16], sizes = [16, 16], strides = [1, 1]} : vector<16x32xf32> to vector<16x16xf32>
    %68 = vector.extract_strided_slice %16 {offsets = [0, 16], sizes = [16, 16], strides = [1, 1]} : vector<16x32xf32> to vector<16x16xf32>
    %69 = arith.addf %67, %68 : vector<16x16xf32>
    %c0_30 = arith.constant 0 : index
    %c0_31 = arith.constant 0 : index
    %70 = vector.load %arg10[%c0_30, %c0_31] : memref<1x16xf32, #tpu.memory_space<vmem>>, vector<1x16xf32>
    %71 = vector.broadcast %70 : vector<1x16xf32> to vector<16x16xf32>
    %72 = arith.addf %69, %71 : vector<16x16xf32>
    %c0_32 = arith.constant 0 : index
    %c16 = arith.constant 16 : index
    %73 = vector.load %arg12[%c0_32, %c16] : memref<16x32xf32, #tpu.memory_space<vmem>>, vector<16x16xf32>
    tpu.vector_store %arg12[%c0_32, %c16], %72 {strides = array<i32>} : memref<16x32xf32, #tpu.memory_space<vmem>>, vector<16x16xf32>,
    return
  }
  func.func @transform_0(%arg0: i32) -> (i32, i32) {
    %c0_i32 = arith.constant 0 : i32
    %c0_i32_0 = arith.constant 0 : i32
    return %arg0, %c0_i32 : i32, i32
  }
  func.func @transform_1(%arg0: i32) -> (i32, i32) {
    %c0_i32 = arith.constant 0 : i32
    %c0_i32_0 = arith.constant 0 : i32
    return %arg0, %c0_i32 : i32, i32
  }
  func.func @transform_2(%arg0: i32) -> (i32, i32) {
    %c0_i32 = arith.constant 0 : i32
    %c0_i32_0 = arith.constant 0 : i32
    return %arg0, %c0_i32 : i32, i32
  }
  func.func @transform_3(%arg0: i32) -> (i32, i32) {
    %c0_i32 = arith.constant 0 : i32
    %c0_i32_0 = arith.constant 0 : i32
    %c0_i32_1 = arith.constant 0 : i32
    return %c0_i32, %c0_i32_0 : i32, i32
  }
  func.func @transform_4(%arg0: i32) -> (i32, i32) {
    %c0_i32 = arith.constant 0 : i32
    %c0_i32_0 = arith.constant 0 : i32
    %c0_i32_1 = arith.constant 0 : i32
    return %c0_i32, %c0_i32_0 : i32, i32
  }
  func.func @transform_5(%arg0: i32) -> (i32, i32) {
    %c0_i32 = arith.constant 0 : i32
    %c0_i32_0 = arith.constant 0 : i32
    %c0_i32_1 = arith.constant 0 : i32
    return %c0_i32, %c0_i32_0 : i32, i32
  }
  func.func @transform_6(%arg0: i32) -> (i32, i32) {
    %c0_i32 = arith.constant 0 : i32
    %c0_i32_0 = arith.constant 0 : i32
    %c0_i32_1 = arith.constant 0 : i32
    return %c0_i32, %c0_i32_0 : i32, i32
  }
  func.func @transform_7(%arg0: i32) -> (i32, i32) {
    %c0_i32 = arith.constant 0 : i32
    %c0_i32_0 = arith.constant 0 : i32
    %c0_i32_1 = arith.constant 0 : i32
    return %c0_i32, %c0_i32_0 : i32, i32
  }
  func.func @transform_8(%arg0: i32) -> (i32, i32) {
    %c0_i32 = arith.constant 0 : i32
    %c0_i32_0 = arith.constant 0 : i32
    %c0_i32_1 = arith.constant 0 : i32
    return %c0_i32, %c0_i32_0 : i32, i32
  }
  func.func @transform_9(%arg0: i32) -> (i32, i32) {
    %c0_i32 = arith.constant 0 : i32
    %c0_i32_0 = arith.constant 0 : i32
    %c0_i32_1 = arith.constant 0 : i32
    return %c0_i32, %c0_i32_0 : i32, i32
  }
  func.func @transform_10(%arg0: i32) -> (i32, i32) {
    %c0_i32 = arith.constant 0 : i32
    %c0_i32_0 = arith.constant 0 : i32
    return %arg0, %c0_i32 : i32, i32
  }
  func.func @transform_11(%arg0: i32) -> (i32, i32) {
    %c0_i32 = arith.constant 0 : i32
    %c0_i32_0 = arith.constant 0 : i32
    return %arg0, %c0_i32 : i32, i32
  }
}

</mosaic_0001>

<llo_original>
// kernel: attn_readout.1
$region0: #{attn_readout.1}
  #allocation0 [shape = 'u32[]', space=smem, size = 0x4, offset = 0x4, fixed_abs, tag = 'smem constant byte address 0x4 - core index']
  #allocation1 [shape = 'u32[144,128]{1,0:T(1,128)}', space=vmem, size = 0x12000, scoped, tag = 'internal scratch']
  %s0 = inlined_call_operand.vmem [shape: f32[256,32], index: 0, kind: input, shape index: {}]
  %s1 = inlined_call_operand.vmem [shape: f32[32,32], index: 1, kind: input, shape index: {}]
  %s2 = inlined_call_operand.vmem [shape: f32[256,1], index: 2, kind: input, shape index: {}]
  %s3 = inlined_call_operand.vmem [shape: f32[128,1], index: 3, kind: input, shape index: {}]
  %s4 = inlined_call_operand.vmem [shape: f32[128,1], index: 4, kind: input, shape index: {}]
  %s5 = inlined_call_operand.vmem [shape: bf16[32,48], index: 5, kind: input, shape index: {}]
  %s6 = inlined_call_operand.vmem [shape: bf16[32,32], index: 6, kind: input, shape index: {}]
  %s7 = inlined_call_operand.vmem [shape: f32[1,16], index: 7, kind: input, shape index: {}]
  %s8 = inlined_call_operand.vmem [shape: bf16[16,2], index: 8, kind: input, shape index: {}]
  %s9 = inlined_call_operand.vmem [shape: f32[1,16], index: 9, kind: input, shape index: {}]
  %s10 = inlined_call_operand.vmem [shape: f32[256,2], index: 10, kind: output, shape index: {0}]
  %s11 = inlined_call_operand.vmem [shape: f32[32,32], index: 11, kind: output, shape index: {1}]
  %12 = xla_tuple %s10, %s11
  %s13 = sld [smem:[#allocation0]]
  $region81: #{attn_readout.1} parent=0
    _
  %s15 = ssub.s32 1, %s13
  %s16 = scalar_select 0, %s15, %s13
  loop: start=0, step=1, limit=4
  $region2: #{attn_readout.1} parent=0 // loop_pre_header
    _
  $region3: #{attn_readout.1} parent=0 // loop_header
    %s18 = sphi 0, %s22
    %p19 = scmp.ge.s32.totalorder %s18, 4
    %s28 = sphi 0, %s30
    %s31 = sphi 0, %s28
    %s32 = sphi 0, %s31
    %s48 = sphi 0, %s32
    %s54 = sphi 0, %s56
    %s57 = sphi 0, %s54
    %s58 = sphi 0, %s57
    %s74 = sphi 0, %s58
    %s80 = sphi 0, %s82
    %s83 = sphi 0, %s80
    %s84 = sphi 0, %s83
    %s100 = sphi 0, %s84
    %s104 = sphi 0, %s104
    %s106 = sphi 0, %s104
    %s107 = sphi 0, %s106
    %s121 = sphi 0, %s107
    %s125 = sphi 0, %s125
    %s127 = sphi 0, %s125
    %s128 = sphi 0, %s127
    %s142 = sphi 0, %s128
    %s146 = sphi 0, %s146
    %s148 = sphi 0, %s146
    %s149 = sphi 0, %s148
    %s163 = sphi 0, %s149
    %s167 = sphi 0, %s167
    %s169 = sphi 0, %s167
    %s170 = sphi 0, %s169
    %s184 = sphi 0, %s170
    %s188 = sphi 0, %s188
    %s190 = sphi 0, %s188
    %s191 = sphi 0, %s190
    %s205 = sphi 0, %s191
    %s209 = sphi 0, %s209
    %s211 = sphi 0, %s209
    %s212 = sphi 0, %s211
    %s226 = sphi 0, %s212
    %s230 = sphi 0, %s230
    %s232 = sphi 0, %s230
    %s233 = sphi 0, %s232
    %s247 = sphi 0, %s233
    %s253 = sphi 0, %s255
    %s256 = sphi 0, %s253
    %s257 = sphi 0, %s256
    %s273 = sphi 0, %s257
    %s279 = sphi 0, %s281
    %s282 = sphi 0, %s279
    %s283 = sphi 0, %s282
    %s299 = sphi 0, %s283
  $region4: #{attn_readout.1} parent=0 // loop_header_branch
    %21 = sbr.rel (%p19) target = $region8
  $region5: #{attn_readout.1} parent=0 // loop_body
    %s23 = ssub.s32 %s18, 1
    %s24 = ssub.s32 %s18, 2
    %s25 = sadd.s32 %s18, 1
    %s26 = ssub.s32 %s18, %s25
    %p27 = scmp.eq.s32.totalorder %s26, 0
    %s29 = sadd.s32 %s28, 1
    %s30 = scalar_select %p27, %s28, %s29
    %p33 = pneg %p27
    %p34 = scmp.eq.s32.totalorder %s18, 1
    %p35 = por %p33, %p34
    %p36 = scmp.ne.s32.totalorder %s28, %s31
    %p37 = scmp.eq.s32.totalorder %s18, 0
    %p38 = por %p36, %p37
    %p39 = scmp.ne.s32.totalorder %s28, %s31
    %p40 = scmp.eq.s32.totalorder %s23, 1
    %p41 = por %p39, %p40
    %p42 = scmp.ne.s32.totalorder %s31, %s32
    %p43 = scmp.eq.s32.totalorder %s23, 0
    %p44 = por %p42, %p43
    %p45 = scmp.ne.s32.totalorder %s31, %s32
    %p46 = scmp.eq.s32.totalorder %s24, 1
    %p47 = por %p45, %p46
    %p49 = scmp.ne.s32.totalorder %s32, %s48
    %p50 = scmp.eq.s32.totalorder %s24, 0
    %p51 = por %p49, %p50
    %s52 = ssub.s32 %s18, %s25
    %p53 = scmp.eq.s32.totalorder %s52, 0
    %s55 = sadd.s32 %s54, 1
    %s56 = scalar_select %p53, %s54, %s55
    %p59 = pneg %p53
    %p60 = scmp.eq.s32.totalorder %s18, 1
    %p61 = por %p59, %p60
    %p62 = scmp.ne.s32.totalorder %s54, %s57
    %p63 = scmp.eq.s32.totalorder %s18, 0
    %p64 = por %p62, %p63
    %p65 = scmp.ne.s32.totalorder %s54, %s57
    %p66 = scmp.eq.s32.totalorder %s23, 1
    %p67 = por %p65, %p66
    %p68 = scmp.ne.s32.totalorder %s57, %s58
    %p69 = scmp.eq.s32.totalorder %s23, 0
    %p70 = por %p68, %p69
    %p71 = scmp.ne.s32.totalorder %s57, %s58
    %p72 = scmp.eq.s32.totalorder %s24, 1
    %p73 = por %p71, %p72
    %p75 = scmp.ne.s32.totalorder %s58, %s74
    %p76 = scmp.eq.s32.totalorder %s24, 0
    %p77 = por %p75, %p76
    %s78 = ssub.s32 %s18, %s25
    %p79 = scmp.eq.s32.totalorder %s78, 0
    %s81 = sadd.s32 %s80, 1
    %s82 = scalar_select %p79, %s80, %s81
    %p85 = pneg %p79
    %p86 = scmp.eq.s32.totalorder %s18, 1
    %p87 = por %p85, %p86
    %p88 = scmp.ne.s32.totalorder %s80, %s83
    %p89 = scmp.eq.s32.totalorder %s18, 0
    %p90 = por %p88, %p89
    %p91 = scmp.ne.s32.totalorder %s80, %s83
    %p92 = scmp.eq.s32.totalorder %s23, 1
    %p93 = por %p91, %p92
    %p94 = scmp.ne.s32.totalorder %s83, %s84
    %p95 = scmp.eq.s32.totalorder %s23, 0
    %p96 = por %p94, %p95
    %p97 = scmp.ne.s32.totalorder %s83, %s84
    %p98 = scmp.eq.s32.totalorder %s24, 1
    %p99 = por %p97, %p98
    %p101 = scmp.ne.s32.totalorder %s84, %s100
    %p102 = scmp.eq.s32.totalorder %s24, 0
    %p103 = por %p101, %p102
    %s105 = sadd.s32 %s104, 1
    %p108 = scmp.eq.s32.totalorder %s18, 1
    %p109 = scmp.ne.s32.totalorder %s104, %s106
    %p110 = scmp.eq.s32.totalorder %s18, 0
    %p111 = por %p109, %p110
    %p112 = scmp.ne.s32.totalorder %s104, %s106
    %p113 = scmp.eq.s32.totalorder %s23, 1
    %p114 = por %p112, %p113
    %p115 = scmp.ne.s32.totalorder %s106, %s107
    %p116 = scmp.eq.s32.totalorder %s23, 0
    %p117 = por %p115, %p116
    %p118 = scmp.ne.s32.totalorder %s106, %s107
    %p119 = scmp.eq.s32.totalorder %s24, 1
    %p120 = por %p118, %p119
    %p122 = scmp.ne.s32.totalorder %s107, %s121
    %p123 = scmp.eq.s32.totalorder %s24, 0
    %p124 = por %p122, %p123
    %s126 = sadd.s32 %s125, 1
    %p129 = scmp.eq.s32.totalorder %s18, 1
    %p130 = scmp.ne.s32.totalorder %s125, %s127
    %p131 = scmp.eq.s32.totalorder %s18, 0
    %p132 = por %p130, %p131
    %p133 = scmp.ne.s32.totalorder %s125, %s127
    %p134 = scmp.eq.s32.totalorder %s23, 1
    %p135 = por %p133, %p134
    %p136 = scmp.ne.s32.totalorder %s127, %s128
    %p137 = scmp.eq.s32.totalorder %s23, 0
    %p138 = por %p136, %p137
    %p139 = scmp.ne.s32.totalorder %s127, %s128
    %p140 = scmp.eq.s32.totalorder %s24, 1
    %p141 = por %p139, %p140
    %p143 = scmp.ne.s32.totalorder %s128, %s142
    %p144 = scmp.eq.s32.totalorder %s24, 0
    %p145 = por %p143, %p144
    %s147 = sadd.s32 %s146, 1
    %p150 = scmp.eq.s32.totalorder %s18, 1
    %p151 = scmp.ne.s32.totalorder %s146, %s148
    %p152 = scmp.eq.s32.totalorder %s18, 0
    %p153 = por %p151, %p152
    %p154 = scmp.ne.s32.totalorder %s146, %s148
    %p155 = scmp.eq.s32.totalorder %s23, 1
    %p156 = por %p154, %p155
    %p157 = scmp.ne.s32.totalorder %s148, %s149
    %p158 = scmp.eq.s32.totalorder %s23, 0
    %p159 = por %p157, %p158
    %p160 = scmp.ne.s32.totalorder %s148, %s149
    %p161 = scmp.eq.s32.totalorder %s24, 1
    %p162 = por %p160, %p161
    %p164 = scmp.ne.s32.totalorder %s149, %s163
    %p165 = scmp.eq.s32.totalorder %s24, 0
    %p166 = por %p164, %p165
    %s168 = sadd.s32 %s167, 1
    %p171 = scmp.eq.s32.totalorder %s18, 1
    %p172 = scmp.ne.s32.totalorder %s167, %s169
    %p173 = scmp.eq.s32.totalorder %s18, 0
    %p174 = por %p172, %p173
    %p175 = scmp.ne.s32.totalorder %s167, %s169
    %p176 = scmp.eq.s32.totalorder %s23, 1
    %p177 = por %p175, %p176
    %p178 = scmp.ne.s32.totalorder %s169, %s170
    %p179 = scmp.eq.s32.totalorder %s23, 0
    %p180 = por %p178, %p179
    %p181 = scmp.ne.s32.totalorder %s169, %s170
    %p182 = scmp.eq.s32.totalorder %s24, 1
    %p183 = por %p181, %p182
    %p185 = scmp.ne.s32.totalorder %s170, %s184
    %p186 = scmp.eq.s32.totalorder %s24, 0
    %p187 = por %p185, %p186
    %s189 = sadd.s32 %s188, 1
    %p192 = scmp.eq.s32.totalorder %s18, 1
    %p193 = scmp.ne.s32.totalorder %s188, %s190
    %p194 = scmp.eq.s32.totalorder %s18, 0
    %p195 = por %p193, %p194
    %p196 = scmp.ne.s32.totalorder %s188, %s190
    %p197 = scmp.eq.s32.totalorder %s23, 1
    %p198 = por %p196, %p197
    %p199 = scmp.ne.s32.totalorder %s190, %s191
    %p200 = scmp.eq.s32.totalorder %s23, 0
    %p201 = por %p199, %p200
    %p202 = scmp.ne.s32.totalorder %s190, %s191
    %p203 = scmp.eq.s32.totalorder %s24, 1
    %p204 = por %p202, %p203
    %p206 = scmp.ne.s32.totalorder %s191, %s205
    %p207 = scmp.eq.s32.totalorder %s24, 0
    %p208 = por %p206, %p207
    %s210 = sadd.s32 %s209, 1
    %p213 = scmp.eq.s32.totalorder %s18, 1
    %p214 = scmp.ne.s32.totalorder %s209, %s211
    %p215 = scmp.eq.s32.totalorder %s18, 0
    %p216 = por %p214, %p215
    %p217 = scmp.ne.s32.totalorder %s209, %s211
    %p218 = scmp.eq.s32.totalorder %s23, 1
    %p219 = por %p217, %p218
    %p220 = scmp.ne.s32.totalorder %s211, %s212
    %p221 = scmp.eq.s32.totalorder %s23, 0
    %p222 = por %p220, %p221
    %p223 = scmp.ne.s32.totalorder %s211, %s212
    %p224 = scmp.eq.s32.totalorder %s24, 1
    %p225 = por %p223, %p224
    %p227 = scmp.ne.s32.totalorder %s212, %s226
    %p228 = scmp.eq.s32.totalorder %s24, 0
    %p229 = por %p227, %p228
    %s231 = sadd.s32 %s230, 1
    %p234 = scmp.eq.s32.totalorder %s18, 1
    %p235 = scmp.ne.s32.totalorder %s230, %s232
    %p236 = scmp.eq.s32.totalorder %s18, 0
    %p237 = por %p235, %p236
    %p238 = scmp.ne.s32.totalorder %s230, %s232
    %p239 = scmp.eq.s32.totalorder %s23, 1
    %p240 = por %p238, %p239
    %p241 = scmp.ne.s32.totalorder %s232, %s233
    %p242 = scmp.eq.s32.totalorder %s23, 0
    %p243 = por %p241, %p242
    %p244 = scmp.ne.s32.totalorder %s232, %s233
    %p245 = scmp.eq.s32.totalorder %s24, 1
    %p246 = por %p244, %p245
    %p248 = scmp.ne.s32.totalorder %s233, %s247
    %p249 = scmp.eq.s32.totalorder %s24, 0
    %p250 = por %p248, %p249
    %s251 = ssub.s32 %s18, %s25
    %p252 = scmp.eq.s32.totalorder %s251, 0
    %s254 = sadd.s32 %s253, 1
    %s255 = scalar_select %p252, %s253, %s254
    %p258 = pneg %p252
    %p259 = scmp.eq.s32.totalorder %s18, 1
    %p260 = por %p258, %p259
    %p261 = scmp.ne.s32.totalorder %s253, %s256
    %p262 = scmp.eq.s32.totalorder %s18, 0
    %p263 = por %p261, %p262
    %p264 = scmp.ne.s32.totalorder %s253, %s256
    %p265 = scmp.eq.s32.totalorder %s23, 1
    %p266 = por %p264, %p265
    %p267 = scmp.ne.s32.totalorder %s256, %s257
    %p268 = scmp.eq.s32.totalorder %s23, 0
    %p269 = por %p267, %p268
    %p270 = scmp.ne.s32.totalorder %s256, %s257
    %p271 = scmp.eq.s32.totalorder %s24, 1
    %p272 = por %p270, %p271
    %p274 = scmp.ne.s32.totalorder %s257, %s273
    %p275 = scmp.eq.s32.totalorder %s24, 0
    %p276 = por %p274, %p275
    %s277 = ssub.s32 %s18, %s25
    %p278 = scmp.eq.s32.totalorder %s277, 0
    %s280 = sadd.s32 %s279, 1
    %s281 = scalar_select %p278, %s279, %s280
    %p284 = pneg %p278
    %p285 = scmp.eq.s32.totalorder %s18, 1
    %p286 = por %p284, %p285
    %p287 = scmp.ne.s32.totalorder %s279, %s282
    %p288 = scmp.eq.s32.totalorder %s18, 0
    %p289 = por %p287, %p288
    %p290 = scmp.ne.s32.totalorder %s279, %s282
    %p291 = scmp.eq.s32.totalorder %s23, 1
    %p292 = por %p290, %p291
    %p293 = scmp.ne.s32.totalorder %s282, %s283
    %p294 = scmp.eq.s32.totalorder %s23, 0
    %p295 = por %p293, %p294
    %p296 = scmp.ne.s32.totalorder %s282, %s283
    %p297 = scmp.eq.s32.totalorder %s24, 1
    %p298 = por %p296, %p297
    %p300 = scmp.ne.s32.totalorder %s283, %s299
    %p301 = scmp.eq.s32.totalorder %s24, 0
    %p302 = por %p300, %p301
    %p303 = scmp.le.s32.totalorder 1, %s18
    %p304 = scmp.lt.s32.totalorder %s18, 3
    %p305 = pnand %p303, %p304
    %p306 = pneg %p305
    // Predicated region
    $region9: #{attn_readout.1} parent=5 // pred_check
      _
    $region10: #{attn_readout.1} parent=5 // pred_check_branch
      %308 = sbr.rel (%p305) target = $region12
    $region11: #{attn_readout.1} parent=5 // pred_region
      %s309 = ssub.s32 %s18, 1
      // Predicated region
      $region13: #{attn_readout.1} parent=11 // pred_check
        %p310 = pneg %p117
      $region14: #{attn_readout.1} parent=11 // pred_check_branch
        %312 = sbr.rel (%p310) target = $region16
      $region15: #{attn_readout.1} parent=11 // pred_region
        _
      $region16: #{attn_readout.1} parent=11 // pred_fallthru
        _
      // Predicated region
      $region17: #{attn_readout.1} parent=11 // pred_check
        %p313 = pneg %p138
      $region18: #{attn_readout.1} parent=11 // pred_check_branch
        %315 = sbr.rel (%p313) target = $region20
      $region19: #{attn_readout.1} parent=11 // pred_region
        _
      $region20: #{attn_readout.1} parent=11 // pred_fallthru
        _
      // Predicated region
      $region21: #{attn_readout.1} parent=11 // pred_check
        %p316 = pneg %p159
      $region22: #{attn_readout.1} parent=11 // pred_check_branch
        %318 = sbr.rel (%p316) target = $region24
      $region23: #{attn_readout.1} parent=11 // pred_region
        _
      $region24: #{attn_readout.1} parent=11 // pred_fallthru
        _
      // Predicated region
      $region25: #{attn_readout.1} parent=11 // pred_check
        %p319 = pneg %p180
      $region26: #{attn_readout.1} parent=11 // pred_check_branch
        %321 = sbr.rel (%p319) target = $region28
      $region27: #{attn_readout.1} parent=11 // pred_region
        _
      $region28: #{attn_readout.1} parent=11 // pred_fallthru
        _
      // Predicated region
      $region29: #{attn_readout.1} parent=11 // pred_check
        %p322 = pneg %p201
      $region30: #{attn_readout.1} parent=11 // pred_check_branch
        %324 = sbr.rel (%p322) target = $region32
      $region31: #{attn_readout.1} parent=11 // pred_region
        _
      $region32: #{attn_readout.1} parent=11 // pred_fallthru
        _
      // Predicated region
      $region33: #{attn_readout.1} parent=11 // pred_check
        %p325 = pneg %p222
      $region34: #{attn_readout.1} parent=11 // pred_check_branch
        %327 = sbr.rel (%p325) target = $region36
      $region35: #{attn_readout.1} parent=11 // pred_region
        _
      $region36: #{attn_readout.1} parent=11 // pred_fallthru
        _
      // Predicated region
      $region37: #{attn_readout.1} parent=11 // pred_check
        %p328 = pneg %p243
      $region38: #{attn_readout.1} parent=11 // pred_check_branch
        %330 = sbr.rel (%p328) target = $region40
      $region39: #{attn_readout.1} parent=11 // pred_region
        _
      $region40: #{attn_readout.1} parent=11 // pred_fallthru
        _
    $region12: #{attn_readout.1} parent=5 // pred_fallthru
      _
    %p331 = scmp.lt.s32.totalorder %s18, 2
    // Predicated region
    $region41: #{attn_readout.1} parent=5 // pred_check
      %p332 = pneg %p331
    $region42: #{attn_readout.1} parent=5 // pred_check_branch
      %334 = sbr.rel (%p332) target = $region44
    $region43: #{attn_readout.1} parent=5 // pred_region
      // Predicated region
      $region45: #{attn_readout.1} parent=43 // pred_check
        %p335 = pneg %p38
      $region46: #{attn_readout.1} parent=43 // pred_check_branch
        %337 = sbr.rel (%p335) target = $region48
      $region47: #{attn_readout.1} parent=43 // pred_region
        %s338 = smul.u32 16, %s18
        %p339 = scmp.lt.s32.totalorder %s338, 31
        %s340 = scalar_select %p339, %s338, 31
        %s341 = smul.addr %s340, 8
        %s342 = scalar_lea.vmem %s0, %s341
        %s343 = smul.u32 16, %s18
      $region48: #{attn_readout.1} parent=43 // pred_fallthru
        _
      // Predicated region
      $region49: #{attn_readout.1} parent=43 // pred_check
        %p344 = pneg %p64
      $region50: #{attn_readout.1} parent=43 // pred_check_branch
        %346 = sbr.rel (%p344) target = $region52
      $region51: #{attn_readout.1} parent=43 // pred_region
        %s347 = smul.u32 2, %s18
        %p348 = scmp.lt.s32.totalorder %s347, 3
        %s349 = scalar_select %p348, %s347, 3
        %s350 = smul.addr %s349, 8
        %s351 = scalar_lea.vmem %s1, %s350
        %s352 = smul.u32 2, %s18
      $region52: #{attn_readout.1} parent=43 // pred_fallthru
        _
      // Predicated region
      $region53: #{attn_readout.1} parent=43 // pred_check
        %p353 = pneg %p90
      $region54: #{attn_readout.1} parent=43 // pred_check_branch
        %355 = sbr.rel (%p353) target = $region56
      $region55: #{attn_readout.1} parent=43 // pred_region
        %s356 = smul.u32 16, %s18
        %p357 = scmp.lt.s32.totalorder %s356, 31
        %s358 = scalar_select %p357, %s356, 31
        %s359 = smul.addr %s358, 8
        %s360 = scalar_lea.vmem %s2, %s359
        %s361 = smul.u32 16, %s18
      $region56: #{attn_readout.1} parent=43 // pred_fallthru
        _
    $region44: #{attn_readout.1} parent=5 // pred_fallthru
      _
    %p362 = scmp.le.s32.totalorder 1, %s18
    %p363 = scmp.lt.s32.totalorder %s18, 3
    %p364 = pnand %p362, %p363
    %p365 = pneg %p364
    // Predicated region
    $region57: #{attn_readout.1} parent=5 // pred_check
      _
    $region58: #{attn_readout.1} parent=5 // pred_check_branch
      %367 = sbr.rel (%p364) target = $region60
    $region59: #{attn_readout.1} parent=5 // pred_region
      %s368 = ssub.s32 %s18, 1
      %s369 = smul.u32 16, %s23
      %p370 = scmp.lt.s32.totalorder %s369, 31
      %s371 = scalar_select %p370, %s369, 31
      %s372 = smul.addr %s371, 8
      %s373 = scalar_lea.vmem %s0, %s372
      %p374 = pneg %p44
      %p375 = pneg %p41
      %s376 = smul.u32 2, %s23
      %p377 = scmp.lt.s32.totalorder %s376, 3
      %s378 = scalar_select %p377, %s376, 3
      %s379 = smul.addr %s378, 8
      %s380 = scalar_lea.vmem %s1, %s379
      %p381 = pneg %p70
      %p382 = pneg %p67
      %s383 = smul.u32 16, %s23
      %p384 = scmp.lt.s32.totalorder %s383, 31
      %s385 = scalar_select %p384, %s383, 31
      %s386 = smul.addr %s385, 8
      %s387 = scalar_lea.vmem %s2, %s386
      %p388 = pneg %p96
      %p389 = pneg %p93
      %p390 = pneg %p117
      %p391 = pneg %p114
      %p392 = pneg %p138
      %p393 = pneg %p135
      %p394 = pneg %p159
      %p395 = pneg %p156
      %p396 = pneg %p180
      %p397 = pneg %p177
      %p398 = pneg %p201
      %p399 = pneg %p198
      %p400 = pneg %p222
      %p401 = pneg %p219
      %p402 = pneg %p243
      %p403 = pneg %p240
      %p404 = pneg %p269
      %p405 = pneg %p266
      %s406 = smul.u32 16, %s23
      %p407 = scmp.lt.s32.totalorder %s406, 31
      %s408 = scalar_select %p407, %s406, 31
      %s409 = smul.addr %s408, 8
      %s410 = scalar_lea.vmem %s10, %s409
      %p411 = pneg %p295
      %p412 = pneg %p292
      %s413 = smul.u32 2, %s23
      %p414 = scmp.lt.s32.totalorder %s413, 3
      %s415 = scalar_select %p414, %s413, 3
      %s416 = smul.addr %s415, 8
      %s417 = scalar_lea.vmem %s11, %s416
      %s418 = smul.u32 16, %s23
      %p419 = scmp.lt.s32.totalorder %s418, 31
      %s420 = scalar_select %p419, %s418, 31
      %s421 = smul.addr %s420, 8
      %s422 = scalar_lea.vmem %s0, %s421
      %s423 = smul.u32 16, %s23
      %s424 = smul.u32 2, %s23
      %p425 = scmp.lt.s32.totalorder %s424, 3
      %s426 = scalar_select %p425, %s424, 3
      %s427 = smul.addr %s426, 8
      %s428 = scalar_lea.vmem %s1, %s427
      %s429 = smul.u32 2, %s23
      %s430 = smul.u32 16, %s23
      %p431 = scmp.lt.s32.totalorder %s430, 31
      %s432 = scalar_select %p431, %s430, 31
      %s433 = smul.addr %s432, 8
      %s434 = scalar_lea.vmem %s2, %s433
      %s435 = smul.u32 16, %s23
      %s436 = smul.u32 16, %s23
      %p437 = scmp.lt.s32.totalorder %s436, 31
      %s438 = scalar_select %p437, %s436, 31
      %s439 = smul.addr %s438, 8
      %s440 = scalar_lea.vmem %s10, %s439
      %s441 = smul.u32 16, %s23
      %s442 = smul.u32 2, %s23
      %p443 = scmp.lt.s32.totalorder %s442, 3
      %s444 = scalar_select %p443, %s442, 3
      %s445 = smul.addr %s444, 8
      %s446 = scalar_lea.vmem %s11, %s445
      %s447 = smul.u32 2, %s23
      %v449 = vld [vmem:[%s434] sm:$0xff]
      %v450 = vld [vmem:[%s434 + $0x8] sm:$0xff]
      %v451 = vld [vmem:[%s434 + $0x10] sm:$0xff]
      %v452 = vld [vmem:[%s434 + $0x18] sm:$0xff]
      %v453 = vld [vmem:[%s434 + $0x20] sm:$0xff]
      %v454 = vld [vmem:[%s434 + $0x28] sm:$0xff]
      %v455 = vld [vmem:[%s434 + $0x30] sm:$0xff]
      %v456 = vld [vmem:[%s434 + $0x38] sm:$0xff]
      %v457 = vld [vmem:[%s434 + $0x40] sm:$0xff]
      %v458 = vld [vmem:[%s434 + $0x48] sm:$0xff]
      %v459 = vld [vmem:[%s434 + $0x50] sm:$0xff]
      %v460 = vld [vmem:[%s434 + $0x58] sm:$0xff]
      %v461 = vld [vmem:[%s434 + $0x60] sm:$0xff]
      %v462 = vld [vmem:[%s434 + $0x68] sm:$0xff]
      %v463 = vld [vmem:[%s434 + $0x70] sm:$0xff]
      %v464 = vld [vmem:[%s434 + $0x78] sm:$0xff]
      %v465 = vld [vmem:[%s422] sm:$0xff]
      %v466 = vld [vmem:[%s422 + $0x8] sm:$0xff]
      %v467 = vld [vmem:[%s422 + $0x10] sm:$0xff]
      %v468 = vld [vmem:[%s422 + $0x18] sm:$0xff]
      %v469 = vld [vmem:[%s422 + $0x20] sm:$0xff]
      %v470 = vld [vmem:[%s422 + $0x28] sm:$0xff]
      %v471 = vld [vmem:[%s422 + $0x30] sm:$0xff]
      %v472 = vld [vmem:[%s422 + $0x38] sm:$0xff]
      %v473 = vld [vmem:[%s422 + $0x40] sm:$0xff]
      %v474 = vld [vmem:[%s422 + $0x48] sm:$0xff]
      %v475 = vld [vmem:[%s422 + $0x50] sm:$0xff]
      %v476 = vld [vmem:[%s422 + $0x58] sm:$0xff]
      %v477 = vld [vmem:[%s422 + $0x60] sm:$0xff]
      %v478 = vld [vmem:[%s422 + $0x68] sm:$0xff]
      %v479 = vld [vmem:[%s422 + $0x70] sm:$0xff]
      %v480 = vld [vmem:[%s422 + $0x78] sm:$0xff]
      %v481 = vld [vmem:[%s3] sm:$0xff]
      %v482 = vld [vmem:[%s3 + $0x8] sm:$0xff]
      %v483 = vld [vmem:[%s3 + $0x10] sm:$0xff]
      %v484 = vld [vmem:[%s3 + $0x18] sm:$0xff]
      %v485 = vld [vmem:[%s3 + $0x20] sm:$0xff]
      %v486 = vld [vmem:[%s3 + $0x28] sm:$0xff]
      %v487 = vld [vmem:[%s3 + $0x30] sm:$0xff]
      %v488 = vld [vmem:[%s3 + $0x38] sm:$0xff]
      %v489 = vld [vmem:[%s3 + $0x40] sm:$0xff]
      %v490 = vld [vmem:[%s3 + $0x48] sm:$0xff]
      %v491 = vld [vmem:[%s3 + $0x50] sm:$0xff]
      %v492 = vld [vmem:[%s3 + $0x58] sm:$0xff]
      %v493 = vld [vmem:[%s3 + $0x60] sm:$0xff]
      %v494 = vld [vmem:[%s3 + $0x68] sm:$0xff]
      %v495 = vld [vmem:[%s3 + $0x70] sm:$0xff]
      %v496 = vld [vmem:[%s3 + $0x78] sm:$0xff]
      %498 = vset.pattern.permute.xlu0 0
      %499 = vperm.xlu0 %498, %v481
      %v500 = vpop.permute.xlu0 %499
      %503 = vset.pattern.permute.xlu0 0
      %504 = vperm.xlu0 %503, %v482
      %v505 = vpop.permute.xlu0 %504
      %508 = vset.pattern.permute.xlu0 0
      %509 = vperm.xlu0 %508, %v483
      %v510 = vpop.permute.xlu0 %509
      %513 = vset.pattern.permute.xlu0 0
      %514 = vperm.xlu0 %513, %v484
      %v515 = vpop.permute.xlu0 %514
      %518 = vset.pattern.permute.xlu0 0
      %519 = vperm.xlu0 %518, %v485
      %v520 = vpop.permute.xlu0 %519
      %523 = vset.pattern.permute.xlu0 0
      %524 = vperm.xlu0 %523, %v486
      %v525 = vpop.permute.xlu0 %524
      %528 = vset.pattern.permute.xlu0 0
      %529 = vperm.xlu0 %528, %v487
      %v530 = vpop.permute.xlu0 %529
      %533 = vset.pattern.permute.xlu0 0
      %534 = vperm.xlu0 %533, %v488
      %v535 = vpop.permute.xlu0 %534
      %538 = vset.pattern.permute.xlu0 0
      %539 = vperm.xlu0 %538, %v489
      %v540 = vpop.permute.xlu0 %539
      %543 = vset.pattern.permute.xlu0 0
      %544 = vperm.xlu0 %543, %v490
      %v545 = vpop.permute.xlu0 %544
      %548 = vset.pattern.permute.xlu0 0
      %549 = vperm.xlu0 %548, %v491
      %v550 = vpop.permute.xlu0 %549
      %553 = vset.pattern.permute.xlu0 0
      %554 = vperm.xlu0 %553, %v492
      %v555 = vpop.permute.xlu0 %554
      %558 = vset.pattern.permute.xlu0 0
      %559 = vperm.xlu0 %558, %v493
      %v560 = vpop.permute.xlu0 %559
      %563 = vset.pattern.permute.xlu0 0
      %564 = vperm.xlu0 %563, %v494
      %v565 = vpop.permute.xlu0 %564
      %568 = vset.pattern.permute.xlu0 0
      %569 = vperm.xlu0 %568, %v495
      %v570 = vpop.permute.xlu0 %569
      %573 = vset.pattern.permute.xlu0 0
      %574 = vperm.xlu0 %573, %v496
      %v575 = vpop.permute.xlu0 %574
      %v577 = vmul.f32 %v465, %v500
      %v578 = vmul.f32 %v466, %v505
      %v579 = vmul.f32 %v467, %v510
      %v580 = vmul.f32 %v468, %v515
      %v581 = vmul.f32 %v469, %v520
      %v582 = vmul.f32 %v470, %v525
      %v583 = vmul.f32 %v471, %v530
      %v584 = vmul.f32 %v472, %v535
      %v585 = vmul.f32 %v473, %v540
      %v586 = vmul.f32 %v474, %v545
      %v587 = vmul.f32 %v475, %v550
      %v588 = vmul.f32 %v476, %v555
      %v589 = vmul.f32 %v477, %v560
      %v590 = vmul.f32 %v478, %v565
      %v591 = vmul.f32 %v479, %v570
      %v592 = vmul.f32 %v480, %v575
      %v593 = vld [vmem:[%s4] sm:$0xff]
      %v594 = vld [vmem:[%s4 + $0x8] sm:$0xff]
      %v595 = vld [vmem:[%s4 + $0x10] sm:$0xff]
      %v596 = vld [vmem:[%s4 + $0x18] sm:$0xff]
      %v597 = vld [vmem:[%s4 + $0x20] sm:$0xff]
      %v598 = vld [vmem:[%s4 + $0x28] sm:$0xff]
      %v599 = vld [vmem:[%s4 + $0x30] sm:$0xff]
      %v600 = vld [vmem:[%s4 + $0x38] sm:$0xff]
      %v601 = vld [vmem:[%s4 + $0x40] sm:$0xff]
      %v602 = vld [vmem:[%s4 + $0x48] sm:$0xff]
      %v603 = vld [vmem:[%s4 + $0x50] sm:$0xff]
      %v604 = vld [vmem:[%s4 + $0x58] sm:$0xff]
      %v605 = vld [vmem:[%s4 + $0x60] sm:$0xff]
      %v606 = vld [vmem:[%s4 + $0x68] sm:$0xff]
      %v607 = vld [vmem:[%s4 + $0x70] sm:$0xff]
      %v608 = vld [vmem:[%s4 + $0x78] sm:$0xff]
      %610 = vset.pattern.permute.xlu0 0
      %611 = vperm.xlu0 %610, %v593
      %v612 = vpop.permute.xlu0 %611
      %615 = vset.pattern.permute.xlu0 0
      %616 = vperm.xlu0 %615, %v594
      %v617 = vpop.permute.xlu0 %616
      %620 = vset.pattern.permute.xlu0 0
      %621 = vperm.xlu0 %620, %v595
      %v622 = vpop.permute.xlu0 %621
      %625 = vset.pattern.permute.xlu0 0
      %626 = vperm.xlu0 %625, %v596
      %v627 = vpop.permute.xlu0 %626
      %630 = vset.pattern.permute.xlu0 0
      %631 = vperm.xlu0 %630, %v597
      %v632 = vpop.permute.xlu0 %631
      %635 = vset.pattern.permute.xlu0 0
      %636 = vperm.xlu0 %635, %v598
      %v637 = vpop.permute.xlu0 %636
      %640 = vset.pattern.permute.xlu0 0
      %641 = vperm.xlu0 %640, %v599
      %v642 = vpop.permute.xlu0 %641
      %645 = vset.pattern.permute.xlu0 0
      %646 = vperm.xlu0 %645, %v600
      %v647 = vpop.permute.xlu0 %646
      %650 = vset.pattern.permute.xlu0 0
      %651 = vperm.xlu0 %650, %v601
      %v652 = vpop.permute.xlu0 %651
      %655 = vset.pattern.permute.xlu0 0
      %656 = vperm.xlu0 %655, %v602
      %v657 = vpop.permute.xlu0 %656
      %660 = vset.pattern.permute.xlu0 0
      %661 = vperm.xlu0 %660, %v603
      %v662 = vpop.permute.xlu0 %661
      %665 = vset.pattern.permute.xlu0 0
      %666 = vperm.xlu0 %665, %v604
      %v667 = vpop.permute.xlu0 %666
      %670 = vset.pattern.permute.xlu0 0
      %671 = vperm.xlu0 %670, %v605
      %v672 = vpop.permute.xlu0 %671
      %675 = vset.pattern.permute.xlu0 0
      %676 = vperm.xlu0 %675, %v606
      %v677 = vpop.permute.xlu0 %676
      %680 = vset.pattern.permute.xlu0 0
      %681 = vperm.xlu0 %680, %v607
      %v682 = vpop.permute.xlu0 %681
      %685 = vset.pattern.permute.xlu0 0
      %686 = vperm.xlu0 %685, %v608
      %v687 = vpop.permute.xlu0 %686
      %v689 = vadd.f32 %v577, %v612
      %v690 = vadd.f32 %v578, %v617
      %v691 = vadd.f32 %v579, %v622
      %v692 = vadd.f32 %v580, %v627
      %v693 = vadd.f32 %v581, %v632
      %v694 = vadd.f32 %v582, %v637
      %v695 = vadd.f32 %v583, %v642
      %v696 = vadd.f32 %v584, %v647
      %v697 = vadd.f32 %v585, %v652
      %v698 = vadd.f32 %v586, %v657
      %v699 = vadd.f32 %v587, %v662
      %v700 = vadd.f32 %v588, %v667
      %v701 = vadd.f32 %v589, %v672
      %v702 = vadd.f32 %v590, %v677
      %v703 = vadd.f32 %v591, %v682
      %v704 = vadd.f32 %v592, %v687
      %706 = vset.pattern.permute.xlu0 0
      %707 = vperm.xlu0 %706, %v449
      %v708 = vpop.permute.xlu0 %707
      %711 = vset.pattern.permute.xlu0 0
      %712 = vperm.xlu0 %711, %v450
      %v713 = vpop.permute.xlu0 %712
      %716 = vset.pattern.permute.xlu0 0
      %717 = vperm.xlu0 %716, %v451
      %v718 = vpop.permute.xlu0 %717
      %721 = vset.pattern.permute.xlu0 0
      %722 = vperm.xlu0 %721, %v452
      %v723 = vpop.permute.xlu0 %722
      %726 = vset.pattern.permute.xlu0 0
      %727 = vperm.xlu0 %726, %v453
      %v728 = vpop.permute.xlu0 %727
      %731 = vset.pattern.permute.xlu0 0
      %732 = vperm.xlu0 %731, %v454
      %v733 = vpop.permute.xlu0 %732
      %736 = vset.pattern.permute.xlu0 0
      %737 = vperm.xlu0 %736, %v455
      %v738 = vpop.permute.xlu0 %737
      %741 = vset.pattern.permute.xlu0 0
      %742 = vperm.xlu0 %741, %v456
      %v743 = vpop.permute.xlu0 %742
      %746 = vset.pattern.permute.xlu0 0
      %747 = vperm.xlu0 %746, %v457
      %v748 = vpop.permute.xlu0 %747
      %751 = vset.pattern.permute.xlu0 0
      %752 = vperm.xlu0 %751, %v458
      %v753 = vpop.permute.xlu0 %752
      %756 = vset.pattern.permute.xlu0 0
      %757 = vperm.xlu0 %756, %v459
      %v758 = vpop.permute.xlu0 %757
      %761 = vset.pattern.permute.xlu0 0
      %762 = vperm.xlu0 %761, %v460
      %v763 = vpop.permute.xlu0 %762
      %766 = vset.pattern.permute.xlu0 0
      %767 = vperm.xlu0 %766, %v461
      %v768 = vpop.permute.xlu0 %767
      %771 = vset.pattern.permute.xlu0 0
      %772 = vperm.xlu0 %771, %v462
      %v773 = vpop.permute.xlu0 %772
      %776 = vset.pattern.permute.xlu0 0
      %777 = vperm.xlu0 %776, %v463
      %v778 = vpop.permute.xlu0 %777
      %781 = vset.pattern.permute.xlu0 0
      %782 = vperm.xlu0 %781, %v464
      %v783 = vpop.permute.xlu0 %782
      %v785 = vmul.f32 %v689, %v708
      %v786 = vmul.f32 %v690, %v713
      %v787 = vmul.f32 %v691, %v718
      %v788 = vmul.f32 %v692, %v723
      %v789 = vmul.f32 %v693, %v728
      %v790 = vmul.f32 %v694, %v733
      %v791 = vmul.f32 %v695, %v738
      %v792 = vmul.f32 %v696, %v743
      %v793 = vmul.f32 %v697, %v748
      %v794 = vmul.f32 %v698, %v753
      %v795 = vmul.f32 %v699, %v758
      %v796 = vmul.f32 %v700, %v763
      %v797 = vmul.f32 %v701, %v768
      %v798 = vmul.f32 %v702, %v773
      %v799 = vmul.f32 %v703, %v778
      %v800 = vmul.f32 %v704, %v783
      %v801 = vpack.c.bf16 %v786, %v785
      %v802 = vpack.c.bf16 %v788, %v787
      %v803 = vpack.c.bf16 %v790, %v789
      %v804 = vpack.c.bf16 %v792, %v791
      %v805 = vpack.c.bf16 %v794, %v793
      %v806 = vpack.c.bf16 %v796, %v795
      %v807 = vpack.c.bf16 %v798, %v797
      %v808 = vpack.c.bf16 %v800, %v799
      %v809 = vld [vmem:[%s5] sm:$0xf]
      %v810 = vld [vmem:[%s5 + $0x4] sm:$0xf]
      %v811 = vld [vmem:[%s5 + $0x8] sm:$0xf]
      %v812 = vld [vmem:[%s5 + $0xc] sm:$0xf]
      %v817 = vunpack.c.l.b16 %v809
      %v818 = vunpack.c.l.b16 %v810
      %v819 = vunpack.c.l.b16 %v811
      %v820 = vunpack.c.l.b16 %v812
      %v821 = vpack.c.b16 %v818, %v817
      %v822 = vpack.c.b16 %v820, %v819
      %vm825 = vcmask 261120
      %v827 = vsel %vm825, %v801, 0
      %v830 = vsel %vm825, %v802, 0
      %v833 = vsel %vm825, %v803, 0
      %v836 = vsel %vm825, %v804, 0
      %v839 = vsel %vm825, %v805, 0
      %v842 = vsel %vm825, %v806, 0
      %v845 = vsel %vm825, %v807, 0
      %v848 = vsel %vm825, %v808, 0
      %850 = vmatprep.subr.bf16.mxu0 0
      %851 = vmatpush1.bf16.msra.mxu0 0
      %852 = vmatprep.subr.bf16.mxu0 0
      %853 = vmatpush1.bf16.msra.mxu0 0
      %854 = vmatprep.subr.bf16.mxu0 0
      %855 = vmatpush1.bf16.msra.mxu0 0
      %856 = vmatprep.subr.bf16.mxu0 0
      %857 = vmatpush1.bf16.msra.mxu0 0
      %858 = vmatprep.subr.bf16.mxu0 0
      %859 = vmatpush1.bf16.msra.mxu0 0
      %860 = vmatprep.subr.bf16.mxu0 0
      %861 = vmatpush1.bf16.msra.mxu0 0
      %862 = vmatprep.subr.bf16.mxu0 0
      %863 = vmatpush1.bf16.msra.mxu0 %v822
      %864 = vmatprep.subr.bf16.mxu0 0
      %865 = vmatpush1.bf16.msra.mxu0 %v821
      %866 = vmatprep.subr.bf16.mxu0 0
      %867 = vmatpush2.bf16.msra.mxu0 0
      %868 = vmatprep.subr.bf16.mxu0 0
      %869 = vmatpush2.bf16.msra.mxu0 0
      %870 = vmatprep.subr.bf16.mxu0 0
      %871 = vmatpush2.bf16.msra.mxu0 0
      %872 = vmatprep.subr.bf16.mxu0 0
      %873 = vmatpush2.bf16.msra.mxu0 0
      %874 = vmatprep.subr.bf16.mxu0 0
      %875 = vmatpush2.bf16.msra.mxu0 0
      %876 = vmatprep.subr.bf16.mxu0 0
      %877 = vmatpush2.bf16.msra.mxu0 0
      %878 = vmatprep.subr.bf16.mxu0 0
      %879 = vmatpush2.bf16.msra.mxu0 0
      %880 = vmatprep.subr.bf16.mxu0 0
      %881 = vmatpush2.bf16.msra.mxu0 0
      %882 = vmatprep.mubr.bf16.mxu0 0
      %883 = vmatmul.mubr.bf16.gmra.mxu0 %v827
      %v884 = vpop.f32.mrf.mxu0
      %v885 = vadd.f32 0.0, %v884
      %v886 = vpop.f32.mrf.mxu0
      %v887 = vpop.f32.mrf.mxu0
      %v888 = vadd.f32 0.0, %v887
      %v889 = vpop.f32.mrf.mxu0
      %890 = vmatprep.mubr.bf16.mxu0 0
      %891 = vmatmul.mubr.bf16.gmra.mxu0 %v830
      %v892 = vpop.f32.mrf.mxu0
      %v893 = vadd.f32 0.0, %v892
      %v894 = vpop.f32.mrf.mxu0
      %v895 = vpop.f32.mrf.mxu0
      %v896 = vadd.f32 0.0, %v895
      %v897 = vpop.f32.mrf.mxu0
      %898 = vmatprep.mubr.bf16.mxu0 0
      %899 = vmatmul.mubr.bf16.gmra.mxu0 %v833
      %v900 = vpop.f32.mrf.mxu0
      %v901 = vadd.f32 0.0, %v900
      %v902 = vpop.f32.mrf.mxu0
      %v903 = vpop.f32.mrf.mxu0
      %v904 = vadd.f32 0.0, %v903
      %v905 = vpop.f32.mrf.mxu0
      %906 = vmatprep.mubr.bf16.mxu0 0
      %907 = vmatmul.mubr.bf16.gmra.mxu0 %v836
      %v908 = vpop.f32.mrf.mxu0
      %v909 = vadd.f32 0.0, %v908
      %v910 = vpop.f32.mrf.mxu0
      %v911 = vpop.f32.mrf.mxu0
      %v912 = vadd.f32 0.0, %v911
      %v913 = vpop.f32.mrf.mxu0
      %914 = vmatprep.mubr.bf16.mxu0 0
      %915 = vmatmul.mubr.bf16.gmra.mxu0 %v839
      %v916 = vpop.f32.mrf.mxu0
      %v917 = vadd.f32 0.0, %v916
      %v918 = vpop.f32.mrf.mxu0
      %v919 = vpop.f32.mrf.mxu0
      %v920 = vadd.f32 0.0, %v919
      %v921 = vpop.f32.mrf.mxu0
      %922 = vmatprep.mubr.bf16.mxu0 0
      %923 = vmatmul.mubr.bf16.gmra.mxu0 %v842
      %v924 = vpop.f32.mrf.mxu0
      %v925 = vadd.f32 0.0, %v924
      %v926 = vpop.f32.mrf.mxu0
      %v927 = vpop.f32.mrf.mxu0
      %v928 = vadd.f32 0.0, %v927
      %v929 = vpop.f32.mrf.mxu0
      %930 = vmatprep.mubr.bf16.mxu0 0
      %931 = vmatmul.mubr.bf16.gmra.mxu0 %v845
      %v932 = vpop.f32.mrf.mxu0
      %v933 = vadd.f32 0.0, %v932
      %v934 = vpop.f32.mrf.mxu0
      %v935 = vpop.f32.mrf.mxu0
      %v936 = vadd.f32 0.0, %v935
      %v937 = vpop.f32.mrf.mxu0
      %938 = vmatprep.mubr.bf16.mxu0 0
      %939 = vmatmul.mubr.bf16.gmra.mxu0 %v848
      %v940 = vpop.f32.mrf.mxu0
      %v941 = vadd.f32 0.0, %v940
      %v942 = vpop.f32.mrf.mxu0
      %v943 = vpop.f32.mrf.mxu0
      %v944 = vadd.f32 0.0, %v943
      %v945 = vpop.f32.mrf.mxu0
      %946 = vdwg.mxu0
      %v947 = vld [vmem:[%s428] sm:$0xff]
      %v948 = vld [vmem:[%s428 + $0x8] sm:$0xff]
      %v949 = vpack.c.bf16 %v948, %v947
      %v950 = vld [vmem:[%s6] sm:$0xf]
      %v951 = vld [vmem:[%s6 + $0x4] sm:$0xf]
      %v952 = vld [vmem:[%s6 + $0x8] sm:$0xf]
      %v953 = vld [vmem:[%s6 + $0xc] sm:$0xf]
      %v958 = vunpack.c.l.b16 %v950
      %v959 = vunpack.c.l.b16 %v951
      %v960 = vunpack.c.l.b16 %v952
      %v961 = vunpack.c.l.b16 %v953
      %v962 = vpack.c.b16 %v959, %v958
      %v963 = vpack.c.b16 %v961, %v960
      %v967 = vsel %vm825, %v949, 0
      %969 = vmatprep.subr.bf16.mxu0 0
      %970 = vmatpush1.bf16.msra.mxu0 0
      %971 = vmatprep.subr.bf16.mxu0 0
      %972 = vmatpush1.bf16.msra.mxu0 0
      %973 = vmatprep.subr.bf16.mxu0 0
      %974 = vmatpush1.bf16.msra.mxu0 0
      %975 = vmatprep.subr.bf16.mxu0 0
      %976 = vmatpush1.bf16.msra.mxu0 0
      %977 = vmatprep.subr.bf16.mxu0 0
      %978 = vmatpush1.bf16.msra.mxu0 0
      %979 = vmatprep.subr.bf16.mxu0 0
      %980 = vmatpush1.bf16.msra.mxu0 0
      %981 = vmatprep.subr.bf16.mxu0 0
      %982 = vmatpush1.bf16.msra.mxu0 %v963
      %983 = vmatprep.subr.bf16.mxu0 0
      %984 = vmatpush1.bf16.msra.mxu0 %v962
      %985 = vmatprep.subr.bf16.mxu0 0
      %986 = vmatpush2.bf16.msra.mxu0 0
      %987 = vmatprep.subr.bf16.mxu0 0
      %988 = vmatpush2.bf16.msra.mxu0 0
      %989 = vmatprep.subr.bf16.mxu0 0
      %990 = vmatpush2.bf16.msra.mxu0 0
      %991 = vmatprep.subr.bf16.mxu0 0
      %992 = vmatpush2.bf16.msra.mxu0 0
      %993 = vmatprep.subr.bf16.mxu0 0
      %994 = vmatpush2.bf16.msra.mxu0 0
      %995 = vmatprep.subr.bf16.mxu0 0
      %996 = vmatpush2.bf16.msra.mxu0 0
      %997 = vmatprep.subr.bf16.mxu0 0
      %998 = vmatpush2.bf16.msra.mxu0 0
      %999 = vmatprep.subr.bf16.mxu0 0
      %1000 = vmatpush2.bf16.msra.mxu0 0
      %1001 = vmatprep.mubr.bf16.mxu0 0
      %1002 = vmatmul.mubr.bf16.gmra.mxu0 %v967
      %v1003 = vpop.f32.mrf.mxu0
      %v1004 = vadd.f32 0.0, %v1003
      %v1005 = vpop.f32.mrf.mxu0
      %v1006 = vpop.f32.mrf.mxu0
      %v1007 = vadd.f32 0.0, %v1006
      %v1008 = vpop.f32.mrf.mxu0
      %1009 = vdwg.mxu0
      %v1010 = vmul.f32 %v885, %v708
      %v1011 = vmul.f32 %v888, %v713
      %v1012 = vmul.f32 %v893, %v718
      %v1013 = vmul.f32 %v896, %v723
      %v1014 = vmul.f32 %v901, %v728
      %v1015 = vmul.f32 %v904, %v733
      %v1016 = vmul.f32 %v909, %v738
      %v1017 = vmul.f32 %v912, %v743
      %v1018 = vmul.f32 %v917, %v748
      %v1019 = vmul.f32 %v920, %v753
      %v1020 = vmul.f32 %v925, %v758
      %v1021 = vmul.f32 %v928, %v763
      %v1022 = vmul.f32 %v933, %v768
      %v1023 = vmul.f32 %v936, %v773
      %v1024 = vmul.f32 %v941, %v778
      %v1025 = vmul.f32 %v944, %v783
      %v1026 = vld [vmem:[%s7] sm:$0x1]
      %v1028 = vlaneseq
      %v1029 = vshrl.u32 %v1028, 7
      %v1030 = vsub.s32 0, %v1029
      %v1031 = vrot.slane %v1026, %v1030
      %v1033 = vadd.f32 %v1004, %v1031
      %v1034 = vadd.f32 %v1007, %v1031
      %v1037 = vcombine.high %v1033, %v1033
      %v1039 = vunpack.c.l.s4 1966171168
      %v1040 = vunpack.c.0.s8 %v1039
      %v1041 = vlaneseq
      %v1042 = vshrl.u32 %v1041, 7
      %v1043 = vsub.s32 %v1040, %v1042
      %v1044 = vrot.slane %v1033, %v1043
      %v1046 = vunpack.c.l.s4 1966171168
      %v1047 = vunpack.c.0.s8 %v1046
      %v1048 = vlaneseq
      %v1049 = vshrl.u32 %v1048, 7
      %v1050 = vsub.s32 %v1047, %v1049
      %v1051 = vrot.slane %v1037, %v1050
      %v1052 = vcombine.high %v1044, %v1044
      %v1053 = vcombine.high %v1051, %v1051
      %v1055 = vunpack.c.l.s4 1966171168
      %v1056 = vunpack.c.0.s8 %v1055
      %v1057 = vlaneseq
      %v1058 = vshrl.u32 %v1057, 7
      %v1059 = vsub.s32 %v1056, %v1058
      %v1060 = vrot.slane %v1044, %v1059
      %v1062 = vunpack.c.l.s4 1966171168
      %v1063 = vunpack.c.0.s8 %v1062
      %v1064 = vlaneseq
      %v1065 = vshrl.u32 %v1064, 7
      %v1066 = vsub.s32 %v1063, %v1065
      %v1067 = vrot.slane %v1051, %v1066
      %v1069 = vunpack.c.l.s4 1966171168
      %v1070 = vunpack.c.0.s8 %v1069
      %v1071 = vlaneseq
      %v1072 = vshrl.u32 %v1071, 7
      %v1073 = vsub.s32 %v1070, %v1072
      %v1074 = vrot.slane %v1052, %v1073
      %v1076 = vunpack.c.l.s4 1966171168
      %v1077 = vunpack.c.0.s8 %v1076
      %v1078 = vlaneseq
      %v1079 = vshrl.u32 %v1078, 7
      %v1080 = vsub.s32 %v1077, %v1079
      %v1081 = vrot.slane %v1053, %v1080
      %v1082 = vcombine.high %v1060, %v1060
      %v1083 = vcombine.high %v1067, %v1067
      %v1084 = vcombine.high %v1074, %v1074
      %v1085 = vcombine.high %v1081, %v1081
      %v1086 = vcombine.high %v1034, %v1034
      %v1088 = vunpack.c.l.s4 1966171168
      %v1089 = vunpack.c.0.s8 %v1088
      %v1090 = vlaneseq
      %v1091 = vshrl.u32 %v1090, 7
      %v1092 = vsub.s32 %v1089, %v1091
      %v1093 = vrot.slane %v1034, %v1092
      %v1095 = vunpack.c.l.s4 1966171168
      %v1096 = vunpack.c.0.s8 %v1095
      %v1097 = vlaneseq
      %v1098 = vshrl.u32 %v1097, 7
      %v1099 = vsub.s32 %v1096, %v1098
      %v1100 = vrot.slane %v1086, %v1099
      %v1101 = vcombine.high %v1093, %v1093
      %v1102 = vcombine.high %v1100, %v1100
      %v1104 = vunpack.c.l.s4 1966171168
      %v1105 = vunpack.c.0.s8 %v1104
      %v1106 = vlaneseq
      %v1107 = vshrl.u32 %v1106, 7
      %v1108 = vsub.s32 %v1105, %v1107
      %v1109 = vrot.slane %v1093, %v1108
      %v1111 = vunpack.c.l.s4 1966171168
      %v1112 = vunpack.c.0.s8 %v1111
      %v1113 = vlaneseq
      %v1114 = vshrl.u32 %v1113, 7
      %v1115 = vsub.s32 %v1112, %v1114
      %v1116 = vrot.slane %v1100, %v1115
      %v1118 = vunpack.c.l.s4 1966171168
      %v1119 = vunpack.c.0.s8 %v1118
      %v1120 = vlaneseq
      %v1121 = vshrl.u32 %v1120, 7
      %v1122 = vsub.s32 %v1119, %v1121
      %v1123 = vrot.slane %v1101, %v1122
      %v1125 = vunpack.c.l.s4 1966171168
      %v1126 = vunpack.c.0.s8 %v1125
      %v1127 = vlaneseq
      %v1128 = vshrl.u32 %v1127, 7
      %v1129 = vsub.s32 %v1126, %v1128
      %v1130 = vrot.slane %v1102, %v1129
      %v1131 = vcombine.high %v1109, %v1109
      %v1132 = vcombine.high %v1116, %v1116
      %v1133 = vcombine.high %v1123, %v1123
      %v1134 = vcombine.high %v1130, %v1130
      %v1135 = vlaneseq
      %v1136 = vshrl.u32 %v1135, 7
      %v1137 = vsub.s32 0, %v1136
      %v1138 = vrot.slane %v1060, %v1137
      %v1139 = vlaneseq
      %v1140 = vshrl.u32 %v1139, 7
      %v1141 = vsub.s32 0, %v1140
      %v1142 = vrot.slane %v1074, %v1141
      %v1143 = vlaneseq
      %v1144 = vshrl.u32 %v1143, 7
      %v1145 = vsub.s32 0, %v1144
      %v1146 = vrot.slane %v1082, %v1145
      %v1147 = vlaneseq
      %v1148 = vshrl.u32 %v1147, 7
      %v1149 = vsub.s32 0, %v1148
      %v1150 = vrot.slane %v1084, %v1149
      %v1151 = vlaneseq
      %v1152 = vshrl.u32 %v1151, 7
      %v1153 = vsub.s32 0, %v1152
      %v1154 = vrot.slane %v1067, %v1153
      %v1155 = vlaneseq
      %v1156 = vshrl.u32 %v1155, 7
      %v1157 = vsub.s32 0, %v1156
      %v1158 = vrot.slane %v1081, %v1157
      %v1159 = vlaneseq
      %v1160 = vshrl.u32 %v1159, 7
      %v1161 = vsub.s32 0, %v1160
      %v1162 = vrot.slane %v1083, %v1161
      %v1163 = vlaneseq
      %v1164 = vshrl.u32 %v1163, 7
      %v1165 = vsub.s32 0, %v1164
      %v1166 = vrot.slane %v1085, %v1165
      %v1167 = vlaneseq
      %v1168 = vshrl.u32 %v1167, 7
      %v1169 = vsub.s32 0, %v1168
      %v1170 = vrot.slane %v1109, %v1169
      %v1171 = vlaneseq
      %v1172 = vshrl.u32 %v1171, 7
      %v1173 = vsub.s32 0, %v1172
      %v1174 = vrot.slane %v1123, %v1173
      %v1175 = vlaneseq
      %v1176 = vshrl.u32 %v1175, 7
      %v1177 = vsub.s32 0, %v1176
      %v1178 = vrot.slane %v1131, %v1177
      %v1179 = vlaneseq
      %v1180 = vshrl.u32 %v1179, 7
      %v1181 = vsub.s32 0, %v1180
      %v1182 = vrot.slane %v1133, %v1181
      %v1183 = vlaneseq
      %v1184 = vshrl.u32 %v1183, 7
      %v1185 = vsub.s32 0, %v1184
      %v1186 = vrot.slane %v1116, %v1185
      %v1187 = vlaneseq
      %v1188 = vshrl.u32 %v1187, 7
      %v1189 = vsub.s32 0, %v1188
      %v1190 = vrot.slane %v1130, %v1189
      %v1191 = vlaneseq
      %v1192 = vshrl.u32 %v1191, 7
      %v1193 = vsub.s32 0, %v1192
      %v1194 = vrot.slane %v1132, %v1193
      %v1195 = vlaneseq
      %v1196 = vshrl.u32 %v1195, 7
      %v1197 = vsub.s32 0, %v1196
      %v1198 = vrot.slane %v1134, %v1197
      %v1215 = vadd.f32 %v1010, %v1138
      %v1216 = vadd.f32 %v1011, %v1142
      %v1217 = vadd.f32 %v1012, %v1146
      %v1218 = vadd.f32 %v1013, %v1150
      %v1219 = vadd.f32 %v1014, %v1154
      %v1220 = vadd.f32 %v1015, %v1158
      %v1221 = vadd.f32 %v1016, %v1162
      %v1222 = vadd.f32 %v1017, %v1166
      %v1223 = vadd.f32 %v1018, %v1170
      %v1224 = vadd.f32 %v1019, %v1174
      %v1225 = vadd.f32 %v1020, %v1178
      %v1226 = vadd.f32 %v1021, %v1182
      %v1227 = vadd.f32 %v1022, %v1186
      %v1228 = vadd.f32 %v1023, %v1190
      %v1229 = vadd.f32 %v1024, %v1194
      %v1230 = vadd.f32 %v1025, %v1198
      %v1231 = vtanh.pop %v1215
      %v1232 = vtanh.pop %v1216
      %v1233 = vtanh.pop %v1217
      %v1234 = vtanh.pop %v1218
      %v1235 = vtanh.pop %v1219
      %v1236 = vtanh.pop %v1220
      %v1237 = vtanh.pop %v1221
      %v1238 = vtanh.pop %v1222
      %v1239 = vtanh.pop %v1223
      %v1240 = vtanh.pop %v1224
      %v1241 = vtanh.pop %v1225
      %v1242 = vtanh.pop %v1226
      %v1243 = vtanh.pop %v1227
      %v1244 = vtanh.pop %v1228
      %v1245 = vtanh.pop %v1229
      %v1246 = vtanh.pop %v1230
      %v1247 = vpack.c.bf16 %v1232, %v1231
      %v1248 = vpack.c.bf16 %v1234, %v1233
      %v1249 = vpack.c.bf16 %v1236, %v1235
      %v1250 = vpack.c.bf16 %v1238, %v1237
      %v1251 = vpack.c.bf16 %v1240, %v1239
      %v1252 = vpack.c.bf16 %v1242, %v1241
      %v1253 = vpack.c.bf16 %v1244, %v1243
      %v1254 = vpack.c.bf16 %v1246, %v1245
      %v1255 = vld [vmem:[%s8] sm:$0xf]
      %v1256 = vld [vmem:[%s8 + $0x4] sm:$0xf]
      %v1259 = vunpack.c.l.b16 %v1255
      %v1260 = vunpack.c.l.b16 %v1256
      %v1261 = vpack.c.b16 %v1260, %v1259
      %vm1263 = vcmask 130048
      %v1265 = vsel %vm1263, %v1247, 0
      %v1268 = vsel %vm1263, %v1248, 0
      %v1271 = vsel %vm1263, %v1249, 0
      %v1274 = vsel %vm1263, %v1250, 0
      %v1277 = vsel %vm1263, %v1251, 0
      %v1280 = vsel %vm1263, %v1252, 0
      %v1283 = vsel %vm1263, %v1253, 0
      %v1286 = vsel %vm1263, %v1254, 0
      %1288 = vmatprep.subr.bf16.mxu0 0
      %1289 = vmatpush1.bf16.msra.mxu0 0
      %1290 = vmatprep.subr.bf16.mxu0 0
      %1291 = vmatpush1.bf16.msra.mxu0 0
      %1292 = vmatprep.subr.bf16.mxu0 0
      %1293 = vmatpush1.bf16.msra.mxu0 0
      %1294 = vmatprep.subr.bf16.mxu0 0
      %1295 = vmatpush1.bf16.msra.mxu0 0
      %1296 = vmatprep.subr.bf16.mxu0 0
      %1297 = vmatpush1.bf16.msra.mxu0 0
      %1298 = vmatprep.subr.bf16.mxu0 0
      %1299 = vmatpush1.bf16.msra.mxu0 0
      %1300 = vmatprep.subr.bf16.mxu0 0
      %1301 = vmatpush1.bf16.msra.mxu0 0
      %1302 = vmatprep.subr.bf16.mxu0 0
      %1303 = vmatpush1.bf16.msra.mxu0 %v1261
      %1304 = vmatprep.subr.bf16.mxu0 0
      %1305 = vmatpush2.bf16.msra.mxu0 0
      %1306 = vmatprep.subr.bf16.mxu0 0
      %1307 = vmatpush2.bf16.msra.mxu0 0
      %1308 = vmatprep.subr.bf16.mxu0 0
      %1309 = vmatpush2.bf16.msra.mxu0 0
      %1310 = vmatprep.subr.bf16.mxu0 0
      %1311 = vmatpush2.bf16.msra.mxu0 0
      %1312 = vmatprep.subr.bf16.mxu0 0
      %1313 = vmatpush2.bf16.msra.mxu0 0
      %1314 = vmatprep.subr.bf16.mxu0 0
      %1315 = vmatpush2.bf16.msra.mxu0 0
      %1316 = vmatprep.subr.bf16.mxu0 0
      %1317 = vmatpush2.bf16.msra.mxu0 0
      %1318 = vmatprep.subr.bf16.mxu0 0
      %1319 = vmatpush2.bf16.msra.mxu0 0
      %1320 = vmatprep.mubr.bf16.mxu0 0
      %1321 = vmatmul.mubr.bf16.gmra.mxu0 %v1265
      %v1322 = vpop.f32.mrf.mxu0
      %v1323 = vadd.f32 0.0, %v1322
      %v1324 = vpop.f32.mrf.mxu0
      %v1325 = vpop.f32.mrf.mxu0
      %v1326 = vadd.f32 0.0, %v1325
      %v1327 = vpop.f32.mrf.mxu0
      %1328 = vmatprep.mubr.bf16.mxu0 0
      %1329 = vmatmul.mubr.bf16.gmra.mxu0 %v1268
      %v1330 = vpop.f32.mrf.mxu0
      %v1331 = vadd.f32 0.0, %v1330
      %v1332 = vpop.f32.mrf.mxu0
      %v1333 = vpop.f32.mrf.mxu0
      %v1334 = vadd.f32 0.0, %v1333
      %v1335 = vpop.f32.mrf.mxu0
      %1336 = vmatprep.mubr.bf16.mxu0 0
      %1337 = vmatmul.mubr.bf16.gmra.mxu0 %v1271
      %v1338 = vpop.f32.mrf.mxu0
      %v1339 = vadd.f32 0.0, %v1338
      %v1340 = vpop.f32.mrf.mxu0
      %v1341 = vpop.f32.mrf.mxu0
      %v1342 = vadd.f32 0.0, %v1341
      %v1343 = vpop.f32.mrf.mxu0
      %1344 = vmatprep.mubr.bf16.mxu0 0
      %1345 = vmatmul.mubr.bf16.gmra.mxu0 %v1274
      %v1346 = vpop.f32.mrf.mxu0
      %v1347 = vadd.f32 0.0, %v1346
      %v1348 = vpop.f32.mrf.mxu0
      %v1349 = vpop.f32.mrf.mxu0
      %v1350 = vadd.f32 0.0, %v1349
      %v1351 = vpop.f32.mrf.mxu0
      %1352 = vmatprep.mubr.bf16.mxu0 0
      %1353 = vmatmul.mubr.bf16.gmra.mxu0 %v1277
      %v1354 = vpop.f32.mrf.mxu0
      %v1355 = vadd.f32 0.0, %v1354
      %v1356 = vpop.f32.mrf.mxu0
      %v1357 = vpop.f32.mrf.mxu0
      %v1358 = vadd.f32 0.0, %v1357
      %v1359 = vpop.f32.mrf.mxu0
      %1360 = vmatprep.mubr.bf16.mxu0 0
      %1361 = vmatmul.mubr.bf16.gmra.mxu0 %v1280
      %v1362 = vpop.f32.mrf.mxu0
      %v1363 = vadd.f32 0.0, %v1362
      %v1364 = vpop.f32.mrf.mxu0
      %v1365 = vpop.f32.mrf.mxu0
      %v1366 = vadd.f32 0.0, %v1365
      %v1367 = vpop.f32.mrf.mxu0
      %1368 = vmatprep.mubr.bf16.mxu0 0
      %1369 = vmatmul.mubr.bf16.gmra.mxu0 %v1283
      %v1370 = vpop.f32.mrf.mxu0
      %v1371 = vadd.f32 0.0, %v1370
      %v1372 = vpop.f32.mrf.mxu0
      %v1373 = vpop.f32.mrf.mxu0
      %v1374 = vadd.f32 0.0, %v1373
      %v1375 = vpop.f32.mrf.mxu0
      %1376 = vmatprep.mubr.bf16.mxu0 0
      %1377 = vmatmul.mubr.bf16.gmra.mxu0 %v1286
      %v1378 = vpop.f32.mrf.mxu0
      %v1379 = vadd.f32 0.0, %v1378
      %v1380 = vpop.f32.mrf.mxu0
      %v1381 = vpop.f32.mrf.mxu0
      %v1382 = vadd.f32 0.0, %v1381
      %v1383 = vpop.f32.mrf.mxu0
      %1384 = vdwg.mxu0
      %v1385 = vmul.f32 %v1323, %v708
      %v1386 = vmul.f32 %v1326, %v713
      %v1387 = vmul.f32 %v1331, %v718
      %v1388 = vmul.f32 %v1334, %v723
      %v1389 = vmul.f32 %v1339, %v728
      %v1390 = vmul.f32 %v1342, %v733
      %v1391 = vmul.f32 %v1347, %v738
      %v1392 = vmul.f32 %v1350, %v743
      %v1393 = vmul.f32 %v1355, %v748
      %v1394 = vmul.f32 %v1358, %v753
      %v1395 = vmul.f32 %v1363, %v758
      %v1396 = vmul.f32 %v1366, %v763
      %v1397 = vmul.f32 %v1371, %v768
      %v1398 = vmul.f32 %v1374, %v773
      %v1399 = vmul.f32 %v1379, %v778
      %v1400 = vmul.f32 %v1382, %v783
      %v1401 = vxor.u32 %v1385, 2147483648
      %v1402 = vxor.u32 %v1386, 2147483648
      %v1403 = vxor.u32 %v1387, 2147483648
      %v1404 = vxor.u32 %v1388, 2147483648
      %v1405 = vxor.u32 %v1389, 2147483648
      %v1406 = vxor.u32 %v1390, 2147483648
      %v1407 = vxor.u32 %v1391, 2147483648
      %v1408 = vxor.u32 %v1392, 2147483648
      %v1409 = vxor.u32 %v1393, 2147483648
      %v1410 = vxor.u32 %v1394, 2147483648
      %v1411 = vxor.u32 %v1395, 2147483648
      %v1412 = vxor.u32 %v1396, 2147483648
      %v1413 = vxor.u32 %v1397, 2147483648
      %v1414 = vxor.u32 %v1398, 2147483648
      %v1415 = vxor.u32 %v1399, 2147483648
      %v1416 = vxor.u32 %v1400, 2147483648
      %v1417 = vmul.f32 %v1401, 1.442695
      %v1418 = vpow.pop %v1417
      %v1419 = vmul.f32 %v1402, 1.442695
      %v1420 = vpow.pop %v1419
      %v1421 = vmul.f32 %v1403, 1.442695
      %v1422 = vpow.pop %v1421
      %v1423 = vmul.f32 %v1404, 1.442695
      %v1424 = vpow.pop %v1423
      %v1425 = vmul.f32 %v1405, 1.442695
      %v1426 = vpow.pop %v1425
      %v1427 = vmul.f32 %v1406, 1.442695
      %v1428 = vpow.pop %v1427
      %v1429 = vmul.f32 %v1407, 1.442695
      %v1430 = vpow.pop %v1429
      %v1431 = vmul.f32 %v1408, 1.442695
      %v1432 = vpow.pop %v1431
      %v1433 = vmul.f32 %v1409, 1.442695
      %v1434 = vpow.pop %v1433
      %v1435 = vmul.f32 %v1410, 1.442695
      %v1436 = vpow.pop %v1435
      %v1437 = vmul.f32 %v1411, 1.442695
      %v1438 = vpow.pop %v1437
      %v1439 = vmul.f32 %v1412, 1.442695
      %v1440 = vpow.pop %v1439
      %v1441 = vmul.f32 %v1413, 1.442695
      %v1442 = vpow.pop %v1441
      %v1443 = vmul.f32 %v1414, 1.442695
      %v1444 = vpow.pop %v1443
      %v1445 = vmul.f32 %v1415, 1.442695
      %v1446 = vpow.pop %v1445
      %v1447 = vmul.f32 %v1416, 1.442695
      %v1448 = vpow.pop %v1447
      %v1449 = vadd.f32 %v1418, 1.0
      %v1450 = vadd.f32 %v1420, 1.0
      %v1451 = vadd.f32 %v1422, 1.0
      %v1452 = vadd.f32 %v1424, 1.0
      %v1453 = vadd.f32 %v1426, 1.0
      %v1454 = vadd.f32 %v1428, 1.0
      %v1455 = vadd.f32 %v1430, 1.0
      %v1456 = vadd.f32 %v1432, 1.0
      %v1457 = vadd.f32 %v1434, 1.0
      %v1458 = vadd.f32 %v1436, 1.0
      %v1459 = vadd.f32 %v1438, 1.0
      %v1460 = vadd.f32 %v1440, 1.0
      %v1461 = vadd.f32 %v1442, 1.0
      %v1462 = vadd.f32 %v1444, 1.0
      %v1463 = vadd.f32 %v1446, 1.0
      %v1464 = vadd.f32 %v1448, 1.0
      %v1465 = vrcp.pop %v1449
      %v1466 = vmul.f32 1.0, %v1465
      %v1467 = vrcp.pop %v1450
      %v1468 = vmul.f32 1.0, %v1467
      %v1469 = vrcp.pop %v1451
      %v1470 = vmul.f32 1.0, %v1469
      %v1471 = vrcp.pop %v1452
      %v1472 = vmul.f32 1.0, %v1471
      %v1473 = vrcp.pop %v1453
      %v1474 = vmul.f32 1.0, %v1473
      %v1475 = vrcp.pop %v1454
      %v1476 = vmul.f32 1.0, %v1475
      %v1477 = vrcp.pop %v1455
      %v1478 = vmul.f32 1.0, %v1477
      %v1479 = vrcp.pop %v1456
      %v1480 = vmul.f32 1.0, %v1479
      %v1481 = vrcp.pop %v1457
      %v1482 = vmul.f32 1.0, %v1481
      %v1483 = vrcp.pop %v1458
      %v1484 = vmul.f32 1.0, %v1483
      %v1485 = vrcp.pop %v1459
      %v1486 = vmul.f32 1.0, %v1485
      %v1487 = vrcp.pop %v1460
      %v1488 = vmul.f32 1.0, %v1487
      %v1489 = vrcp.pop %v1461
      %v1490 = vmul.f32 1.0, %v1489
      %v1491 = vrcp.pop %v1462
      %v1492 = vmul.f32 1.0, %v1491
      %v1493 = vrcp.pop %v1463
      %v1494 = vmul.f32 1.0, %v1493
      %v1495 = vrcp.pop %v1464
      %v1496 = vmul.f32 1.0, %v1495
      %vm1497 = vcmask 15360
      %1498 = vst.msk [vmem:[%s440] sm:$0xff] %vm1497, %v1466
      %1499 = vst.msk [vmem:[%s440 + $0x8] sm:$0xff] %vm1497, %v1468
      %1500 = vst.msk [vmem:[%s440 + $0x10] sm:$0xff] %vm1497, %v1470
      %1501 = vst.msk [vmem:[%s440 + $0x18] sm:$0xff] %vm1497, %v1472
      %1502 = vst.msk [vmem:[%s440 + $0x20] sm:$0xff] %vm1497, %v1474
      %1503 = vst.msk [vmem:[%s440 + $0x28] sm:$0xff] %vm1497, %v1476
      %1504 = vst.msk [vmem:[%s440 + $0x30] sm:$0xff] %vm1497, %v1478
      %1505 = vst.msk [vmem:[%s440 + $0x38] sm:$0xff] %vm1497, %v1480
      %1506 = vst.msk [vmem:[%s440 + $0x40] sm:$0xff] %vm1497, %v1482
      %1507 = vst.msk [vmem:[%s440 + $0x48] sm:$0xff] %vm1497, %v1484
      %1508 = vst.msk [vmem:[%s440 + $0x50] sm:$0xff] %vm1497, %v1486
      %1509 = vst.msk [vmem:[%s440 + $0x58] sm:$0xff] %vm1497, %v1488
      %1510 = vst.msk [vmem:[%s440 + $0x60] sm:$0xff] %vm1497, %v1490
      %1511 = vst.msk [vmem:[%s440 + $0x68] sm:$0xff] %vm1497, %v1492
      %1512 = vst.msk [vmem:[%s440 + $0x70] sm:$0xff] %vm1497, %v1494
      %1513 = vst.msk [vmem:[%s440 + $0x78] sm:$0xff] %vm1497, %v1496
      %vm1514 = vcmp.gt.f32.partialorder %v449, 0.0
      %vm1515 = vcmp.gt.f32.partialorder %v450, 0.0
      %vm1516 = vcmp.gt.f32.partialorder %v451, 0.0
      %vm1517 = vcmp.gt.f32.partialorder %v452, 0.0
      %vm1518 = vcmp.gt.f32.partialorder %v453, 0.0
      %vm1519 = vcmp.gt.f32.partialorder %v454, 0.0
      %vm1520 = vcmp.gt.f32.partialorder %v455, 0.0
      %vm1521 = vcmp.gt.f32.partialorder %v456, 0.0
      %vm1522 = vcmp.gt.f32.partialorder %v457, 0.0
      %vm1523 = vcmp.gt.f32.partialorder %v458, 0.0
      %vm1524 = vcmp.gt.f32.partialorder %v459, 0.0
      %vm1525 = vcmp.gt.f32.partialorder %v460, 0.0
      %vm1526 = vcmp.gt.f32.partialorder %v461, 0.0
      %vm1527 = vcmp.gt.f32.partialorder %v462, 0.0
      %vm1528 = vcmp.gt.f32.partialorder %v463, 0.0
      %vm1529 = vcmp.gt.f32.partialorder %v464, 0.0
      %v1530 = vsel %vm1514, 0.0, -1e+30
      %v1531 = vsel %vm1515, 0.0, -1e+30
      %v1532 = vsel %vm1516, 0.0, -1e+30
      %v1533 = vsel %vm1517, 0.0, -1e+30
      %v1534 = vsel %vm1518, 0.0, -1e+30
      %v1535 = vsel %vm1519, 0.0, -1e+30
      %v1536 = vsel %vm1520, 0.0, -1e+30
      %v1537 = vsel %vm1521, 0.0, -1e+30
      %v1538 = vsel %vm1522, 0.0, -1e+30
      %v1539 = vsel %vm1523, 0.0, -1e+30
      %v1540 = vsel %vm1524, 0.0, -1e+30
      %v1541 = vsel %vm1525, 0.0, -1e+30
      %v1542 = vsel %vm1526, 0.0, -1e+30
      %v1543 = vsel %vm1527, 0.0, -1e+30
      %v1544 = vsel %vm1528, 0.0, -1e+30
      %v1545 = vsel %vm1529, 0.0, -1e+30
      %1562 = vrot.lane.b32.xlu0 %v1530, 1
      %v1563 = vpop.permute.xlu0 %1562
      %1564 = vrot.lane.b32.xlu0 %v1531, 1
      %v1565 = vpop.permute.xlu0 %1564
      %1566 = vrot.lane.b32.xlu0 %v1532, 1
      %v1567 = vpop.permute.xlu0 %1566
      %1568 = vrot.lane.b32.xlu0 %v1533, 1
      %v1569 = vpop.permute.xlu0 %1568
      %1570 = vrot.lane.b32.xlu0 %v1534, 1
      %v1571 = vpop.permute.xlu0 %1570
      %1572 = vrot.lane.b32.xlu0 %v1535, 1
      %v1573 = vpop.permute.xlu0 %1572
      %1574 = vrot.lane.b32.xlu0 %v1536, 1
      %v1575 = vpop.permute.xlu0 %1574
      %1576 = vrot.lane.b32.xlu0 %v1537, 1
      %v1577 = vpop.permute.xlu0 %1576
      %1578 = vrot.lane.b32.xlu0 %v1538, 1
      %v1579 = vpop.permute.xlu0 %1578
      %1580 = vrot.lane.b32.xlu0 %v1539, 1
      %v1581 = vpop.permute.xlu0 %1580
      %1582 = vrot.lane.b32.xlu0 %v1540, 1
      %v1583 = vpop.permute.xlu0 %1582
      %1584 = vrot.lane.b32.xlu0 %v1541, 1
      %v1585 = vpop.permute.xlu0 %1584
      %1586 = vrot.lane.b32.xlu0 %v1542, 1
      %v1587 = vpop.permute.xlu0 %1586
      %1588 = vrot.lane.b32.xlu0 %v1543, 1
      %v1589 = vpop.permute.xlu0 %1588
      %1590 = vrot.lane.b32.xlu0 %v1544, 1
      %v1591 = vpop.permute.xlu0 %1590
      %1592 = vrot.lane.b32.xlu0 %v1545, 1
      %v1593 = vpop.permute.xlu0 %1592
      %v1610 = vadd.f32 %v1466, %v1563
      %v1611 = vadd.f32 %v1468, %v1565
      %v1612 = vadd.f32 %v1470, %v1567
      %v1613 = vadd.f32 %v1472, %v1569
      %v1614 = vadd.f32 %v1474, %v1571
      %v1615 = vadd.f32 %v1476, %v1573
      %v1616 = vadd.f32 %v1478, %v1575
      %v1617 = vadd.f32 %v1480, %v1577
      %v1618 = vadd.f32 %v1482, %v1579
      %v1619 = vadd.f32 %v1484, %v1581
      %v1620 = vadd.f32 %v1486, %v1583
      %v1621 = vadd.f32 %v1488, %v1585
      %v1622 = vadd.f32 %v1490, %v1587
      %v1623 = vadd.f32 %v1492, %v1589
      %v1624 = vadd.f32 %v1494, %v1591
      %v1625 = vadd.f32 %v1496, %v1593
      %vm1626 = vcmask 15368
      %v1627 = vsel %vm1626, %v1610, -inf
      %v1628 = vrot.slane %v1627, 4
      %v1629 = vmax.f32 %v1627, %v1628
      %v1630 = vrot.slane %v1629, 2
      %v1631 = vmax.f32 %v1629, %v1630
      %v1632 = vrot.slane %v1631, 1
      %v1633 = vmax.f32 %v1631, %v1632
      %v1634 = vsel %vm1626, %v1611, -inf
      %v1635 = vrot.slane %v1634, 4
      %v1636 = vmax.f32 %v1634, %v1635
      %v1637 = vrot.slane %v1636, 2
      %v1638 = vmax.f32 %v1636, %v1637
      %v1639 = vrot.slane %v1638, 1
      %v1640 = vmax.f32 %v1638, %v1639
      %v1641 = vsel %vm1626, %v1612, -inf
      %v1642 = vrot.slane %v1641, 4
      %v1643 = vmax.f32 %v1641, %v1642
      %v1644 = vrot.slane %v1643, 2
      %v1645 = vmax.f32 %v1643, %v1644
      %v1646 = vrot.slane %v1645, 1
      %v1647 = vmax.f32 %v1645, %v1646
      %v1648 = vsel %vm1626, %v1613, -inf
      %v1649 = vrot.slane %v1648, 4
      %v1650 = vmax.f32 %v1648, %v1649
      %v1651 = vrot.slane %v1650, 2
      %v1652 = vmax.f32 %v1650, %v1651
      %v1653 = vrot.slane %v1652, 1
      %v1654 = vmax.f32 %v1652, %v1653
      %v1655 = vsel %vm1626, %v1614, -inf
      %v1656 = vrot.slane %v1655, 4
      %v1657 = vmax.f32 %v1655, %v1656
      %v1658 = vrot.slane %v1657, 2
      %v1659 = vmax.f32 %v1657, %v1658
      %v1660 = vrot.slane %v1659, 1
      %v1661 = vmax.f32 %v1659, %v1660
      %v1662 = vsel %vm1626, %v1615, -inf
      %v1663 = vrot.slane %v1662, 4
      %v1664 = vmax.f32 %v1662, %v1663
      %v1665 = vrot.slane %v1664, 2
      %v1666 = vmax.f32 %v1664, %v1665
      %v1667 = vrot.slane %v1666, 1
      %v1668 = vmax.f32 %v1666, %v1667
      %v1669 = vsel %vm1626, %v1616, -inf
      %v1670 = vrot.slane %v1669, 4
      %v1671 = vmax.f32 %v1669, %v1670
      %v1672 = vrot.slane %v1671, 2
      %v1673 = vmax.f32 %v1671, %v1672
      %v1674 = vrot.slane %v1673, 1
      %v1675 = vmax.f32 %v1673, %v1674
      %v1676 = vsel %vm1626, %v1617, -inf
      %v1677 = vrot.slane %v1676, 4
      %v1678 = vmax.f32 %v1676, %v1677
      %v1679 = vrot.slane %v1678, 2
      %v1680 = vmax.f32 %v1678, %v1679
      %v1681 = vrot.slane %v1680, 1
      %v1682 = vmax.f32 %v1680, %v1681
      %v1683 = vsel %vm1626, %v1618, -inf
      %v1684 = vrot.slane %v1683, 4
      %v1685 = vmax.f32 %v1683, %v1684
      %v1686 = vrot.slane %v1685, 2
      %v1687 = vmax.f32 %v1685, %v1686
      %v1688 = vrot.slane %v1687, 1
      %v1689 = vmax.f32 %v1687, %v1688
      %v1690 = vsel %vm1626, %v1619, -inf
      %v1691 = vrot.slane %v1690, 4
      %v1692 = vmax.f32 %v1690, %v1691
      %v1693 = vrot.slane %v1692, 2
      %v1694 = vmax.f32 %v1692, %v1693
      %v1695 = vrot.slane %v1694, 1
      %v1696 = vmax.f32 %v1694, %v1695
      %v1697 = vsel %vm1626, %v1620, -inf
      %v1698 = vrot.slane %v1697, 4
      %v1699 = vmax.f32 %v1697, %v1698
      %v1700 = vrot.slane %v1699, 2
      %v1701 = vmax.f32 %v1699, %v1700
      %v1702 = vrot.slane %v1701, 1
      %v1703 = vmax.f32 %v1701, %v1702
      %v1704 = vsel %vm1626, %v1621, -inf
      %v1705 = vrot.slane %v1704, 4
      %v1706 = vmax.f32 %v1704, %v1705
      %v1707 = vrot.slane %v1706, 2
      %v1708 = vmax.f32 %v1706, %v1707
      %v1709 = vrot.slane %v1708, 1
      %v1710 = vmax.f32 %v1708, %v1709
      %v1711 = vsel %vm1626, %v1622, -inf
      %v1712 = vrot.slane %v1711, 4
      %v1713 = vmax.f32 %v1711, %v1712
      %v1714 = vrot.slane %v1713, 2
      %v1715 = vmax.f32 %v1713, %v1714
      %v1716 = vrot.slane %v1715, 1
      %v1717 = vmax.f32 %v1715, %v1716
      %v1718 = vsel %vm1626, %v1623, -inf
      %v1719 = vrot.slane %v1718, 4
      %v1720 = vmax.f32 %v1718, %v1719
      %v1721 = vrot.slane %v1720, 2
      %v1722 = vmax.f32 %v1720, %v1721
      %v1723 = vrot.slane %v1722, 1
      %v1724 = vmax.f32 %v1722, %v1723
      %v1725 = vsel %vm1626, %v1624, -inf
      %v1726 = vrot.slane %v1725, 4
      %v1727 = vmax.f32 %v1725, %v1726
      %v1728 = vrot.slane %v1727, 2
      %v1729 = vmax.f32 %v1727, %v1728
      %v1730 = vrot.slane %v1729, 1
      %v1731 = vmax.f32 %v1729, %v1730
      %v1732 = vsel %vm1626, %v1625, -inf
      %v1733 = vrot.slane %v1732, 4
      %v1734 = vmax.f32 %v1732, %v1733
      %v1735 = vrot.slane %v1734, 2
      %v1736 = vmax.f32 %v1734, %v1735
      %v1737 = vrot.slane %v1736, 1
      %v1738 = vmax.f32 %v1736, %v1737
      %v1739 = vsub.f32 %v1610, %v1633
      %v1740 = vsub.f32 %v1611, %v1640
      %v1741 = vsub.f32 %v1612, %v1647
      %v1742 = vsub.f32 %v1613, %v1654
      %v1743 = vsub.f32 %v1614, %v1661
      %v1744 = vsub.f32 %v1615, %v1668
      %v1745 = vsub.f32 %v1616, %v1675
      %v1746 = vsub.f32 %v1617, %v1682
      %v1747 = vsub.f32 %v1618, %v1689
      %v1748 = vsub.f32 %v1619, %v1696
      %v1749 = vsub.f32 %v1620, %v1703
      %v1750 = vsub.f32 %v1621, %v1710
      %v1751 = vsub.f32 %v1622, %v1717
      %v1752 = vsub.f32 %v1623, %v1724
      %v1753 = vsub.f32 %v1624, %v1731
      %v1754 = vsub.f32 %v1625, %v1738
      %v1755 = vmul.f32 %v1739, 1.442695
      %v1756 = vpow.pop %v1755
      %v1757 = vmul.f32 %v1740, 1.442695
      %v1758 = vpow.pop %v1757
      %v1759 = vmul.f32 %v1741, 1.442695
      %v1760 = vpow.pop %v1759
      %v1761 = vmul.f32 %v1742, 1.442695
      %v1762 = vpow.pop %v1761
      %v1763 = vmul.f32 %v1743, 1.442695
      %v1764 = vpow.pop %v1763
      %v1765 = vmul.f32 %v1744, 1.442695
      %v1766 = vpow.pop %v1765
      %v1767 = vmul.f32 %v1745, 1.442695
      %v1768 = vpow.pop %v1767
      %v1769 = vmul.f32 %v1746, 1.442695
      %v1770 = vpow.pop %v1769
      %v1771 = vmul.f32 %v1747, 1.442695
      %v1772 = vpow.pop %v1771
      %v1773 = vmul.f32 %v1748, 1.442695
      %v1774 = vpow.pop %v1773
      %v1775 = vmul.f32 %v1749, 1.442695
      %v1776 = vpow.pop %v1775
      %v1777 = vmul.f32 %v1750, 1.442695
      %v1778 = vpow.pop %v1777
      %v1779 = vmul.f32 %v1751, 1.442695
      %v1780 = vpow.pop %v1779
      %v1781 = vmul.f32 %v1752, 1.442695
      %v1782 = vpow.pop %v1781
      %v1783 = vmul.f32 %v1753, 1.442695
      %v1784 = vpow.pop %v1783
      %v1785 = vmul.f32 %v1754, 1.442695
      %v1786 = vpow.pop %v1785
      %v1787 = vsel %vm1626, %v1756, 0.0
      %v1788 = vrot.slane %v1787, 4
      %v1789 = vadd.f32 %v1787, %v1788
      %v1790 = vrot.slane %v1789, 2
      %v1791 = vadd.f32 %v1789, %v1790
      %v1792 = vrot.slane %v1791, 1
      %v1793 = vadd.f32 %v1791, %v1792
      %v1794 = vsel %vm1626, %v1758, 0.0
      %v1795 = vrot.slane %v1794, 4
      %v1796 = vadd.f32 %v1794, %v1795
      %v1797 = vrot.slane %v1796, 2
      %v1798 = vadd.f32 %v1796, %v1797
      %v1799 = vrot.slane %v1798, 1
      %v1800 = vadd.f32 %v1798, %v1799
      %v1801 = vsel %vm1626, %v1760, 0.0
      %v1802 = vrot.slane %v1801, 4
      %v1803 = vadd.f32 %v1801, %v1802
      %v1804 = vrot.slane %v1803, 2
      %v1805 = vadd.f32 %v1803, %v1804
      %v1806 = vrot.slane %v1805, 1
      %v1807 = vadd.f32 %v1805, %v1806
      %v1808 = vsel %vm1626, %v1762, 0.0
      %v1809 = vrot.slane %v1808, 4
      %v1810 = vadd.f32 %v1808, %v1809
      %v1811 = vrot.slane %v1810, 2
      %v1812 = vadd.f32 %v1810, %v1811
      %v1813 = vrot.slane %v1812, 1
      %v1814 = vadd.f32 %v1812, %v1813
      %v1815 = vsel %vm1626, %v1764, 0.0
      %v1816 = vrot.slane %v1815, 4
      %v1817 = vadd.f32 %v1815, %v1816
      %v1818 = vrot.slane %v1817, 2
      %v1819 = vadd.f32 %v1817, %v1818
      %v1820 = vrot.slane %v1819, 1
      %v1821 = vadd.f32 %v1819, %v1820
      %v1822 = vsel %vm1626, %v1766, 0.0
      %v1823 = vrot.slane %v1822, 4
      %v1824 = vadd.f32 %v1822, %v1823
      %v1825 = vrot.slane %v1824, 2
      %v1826 = vadd.f32 %v1824, %v1825
      %v1827 = vrot.slane %v1826, 1
      %v1828 = vadd.f32 %v1826, %v1827
      %v1829 = vsel %vm1626, %v1768, 0.0
      %v1830 = vrot.slane %v1829, 4
      %v1831 = vadd.f32 %v1829, %v1830
      %v1832 = vrot.slane %v1831, 2
      %v1833 = vadd.f32 %v1831, %v1832
      %v1834 = vrot.slane %v1833, 1
      %v1835 = vadd.f32 %v1833, %v1834
      %v1836 = vsel %vm1626, %v1770, 0.0
      %v1837 = vrot.slane %v1836, 4
      %v1838 = vadd.f32 %v1836, %v1837
      %v1839 = vrot.slane %v1838, 2
      %v1840 = vadd.f32 %v1838, %v1839
      %v1841 = vrot.slane %v1840, 1
      %v1842 = vadd.f32 %v1840, %v1841
      %v1843 = vsel %vm1626, %v1772, 0.0
      %v1844 = vrot.slane %v1843, 4
      %v1845 = vadd.f32 %v1843, %v1844
      %v1846 = vrot.slane %v1845, 2
      %v1847 = vadd.f32 %v1845, %v1846
      %v1848 = vrot.slane %v1847, 1
      %v1849 = vadd.f32 %v1847, %v1848
      %v1850 = vsel %vm1626, %v1774, 0.0
      %v1851 = vrot.slane %v1850, 4
      %v1852 = vadd.f32 %v1850, %v1851
      %v1853 = vrot.slane %v1852, 2
      %v1854 = vadd.f32 %v1852, %v1853
      %v1855 = vrot.slane %v1854, 1
      %v1856 = vadd.f32 %v1854, %v1855
      %v1857 = vsel %vm1626, %v1776, 0.0
      %v1858 = vrot.slane %v1857, 4
      %v1859 = vadd.f32 %v1857, %v1858
      %v1860 = vrot.slane %v1859, 2
      %v1861 = vadd.f32 %v1859, %v1860
      %v1862 = vrot.slane %v1861, 1
      %v1863 = vadd.f32 %v1861, %v1862
      %v1864 = vsel %vm1626, %v1778, 0.0
      %v1865 = vrot.slane %v1864, 4
      %v1866 = vadd.f32 %v1864, %v1865
      %v1867 = vrot.slane %v1866, 2
      %v1868 = vadd.f32 %v1866, %v1867
      %v1869 = vrot.slane %v1868, 1
      %v1870 = vadd.f32 %v1868, %v1869
      %v1871 = vsel %vm1626, %v1780, 0.0
      %v1872 = vrot.slane %v1871, 4
      %v1873 = vadd.f32 %v1871, %v1872
      %v1874 = vrot.slane %v1873, 2
      %v1875 = vadd.f32 %v1873, %v1874
      %v1876 = vrot.slane %v1875, 1
      %v1877 = vadd.f32 %v1875, %v1876
      %v1878 = vsel %vm1626, %v1782, 0.0
      %v1879 = vrot.slane %v1878, 4
      %v1880 = vadd.f32 %v1878, %v1879
      %v1881 = vrot.slane %v1880, 2
      %v1882 = vadd.f32 %v1880, %v1881
      %v1883 = vrot.slane %v1882, 1
      %v1884 = vadd.f32 %v1882, %v1883
      %v1885 = vsel %vm1626, %v1784, 0.0
      %v1886 = vrot.slane %v1885, 4
      %v1887 = vadd.f32 %v1885, %v1886
      %v1888 = vrot.slane %v1887, 2
      %v1889 = vadd.f32 %v1887, %v1888
      %v1890 = vrot.slane %v1889, 1
      %v1891 = vadd.f32 %v1889, %v1890
      %v1892 = vsel %vm1626, %v1786, 0.0
      %v1893 = vrot.slane %v1892, 4
      %v1894 = vadd.f32 %v1892, %v1893
      %v1895 = vrot.slane %v1894, 2
      %v1896 = vadd.f32 %v1894, %v1895
      %v1897 = vrot.slane %v1896, 1
      %v1898 = vadd.f32 %v1896, %v1897
      %v1899 = vrcp.pop %v1793
      %v1900 = vmul.f32 %v1756, %v1899
      %v1901 = vrcp.pop %v1800
      %v1902 = vmul.f32 %v1758, %v1901
      %v1903 = vrcp.pop %v1807
      %v1904 = vmul.f32 %v1760, %v1903
      %v1905 = vrcp.pop %v1814
      %v1906 = vmul.f32 %v1762, %v1905
      %v1907 = vrcp.pop %v1821
      %v1908 = vmul.f32 %v1764, %v1907
      %v1909 = vrcp.pop %v1828
      %v1910 = vmul.f32 %v1766, %v1909
      %v1911 = vrcp.pop %v1835
      %v1912 = vmul.f32 %v1768, %v1911
      %v1913 = vrcp.pop %v1842
      %v1914 = vmul.f32 %v1770, %v1913
      %v1915 = vrcp.pop %v1849
      %v1916 = vmul.f32 %v1772, %v1915
      %v1917 = vrcp.pop %v1856
      %v1918 = vmul.f32 %v1774, %v1917
      %v1919 = vrcp.pop %v1863
      %v1920 = vmul.f32 %v1776, %v1919
      %v1921 = vrcp.pop %v1870
      %v1922 = vmul.f32 %v1778, %v1921
      %v1923 = vrcp.pop %v1877
      %v1924 = vmul.f32 %v1780, %v1923
      %v1925 = vrcp.pop %v1884
      %v1926 = vmul.f32 %v1782, %v1925
      %v1927 = vrcp.pop %v1891
      %v1928 = vmul.f32 %v1784, %v1927
      %v1929 = vrcp.pop %v1898
      %v1930 = vmul.f32 %v1786, %v1929
      %1931 = vrot.lane.b32.xlu0 %v449, 1
      %v1932 = vpop.permute.xlu0 %1931
      %1933 = vrot.lane.b32.xlu0 %v450, 1
      %v1934 = vpop.permute.xlu0 %1933
      %1935 = vrot.lane.b32.xlu0 %v451, 1
      %v1936 = vpop.permute.xlu0 %1935
      %1937 = vrot.lane.b32.xlu0 %v452, 1
      %v1938 = vpop.permute.xlu0 %1937
      %1939 = vrot.lane.b32.xlu0 %v453, 1
      %v1940 = vpop.permute.xlu0 %1939
      %1941 = vrot.lane.b32.xlu0 %v454, 1
      %v1942 = vpop.permute.xlu0 %1941
      %1943 = vrot.lane.b32.xlu0 %v455, 1
      %v1944 = vpop.permute.xlu0 %1943
      %1945 = vrot.lane.b32.xlu0 %v456, 1
      %v1946 = vpop.permute.xlu0 %1945
      %1947 = vrot.lane.b32.xlu0 %v457, 1
      %v1948 = vpop.permute.xlu0 %1947
      %1949 = vrot.lane.b32.xlu0 %v458, 1
      %v1950 = vpop.permute.xlu0 %1949
      %1951 = vrot.lane.b32.xlu0 %v459, 1
      %v1952 = vpop.permute.xlu0 %1951
      %1953 = vrot.lane.b32.xlu0 %v460, 1
      %v1954 = vpop.permute.xlu0 %1953
      %1955 = vrot.lane.b32.xlu0 %v461, 1
      %v1956 = vpop.permute.xlu0 %1955
      %1957 = vrot.lane.b32.xlu0 %v462, 1
      %v1958 = vpop.permute.xlu0 %1957
      %1959 = vrot.lane.b32.xlu0 %v463, 1
      %v1960 = vpop.permute.xlu0 %1959
      %1961 = vrot.lane.b32.xlu0 %v464, 1
      %v1962 = vpop.permute.xlu0 %1961
      %v1979 = vmul.f32 %v1900, %v1932
      %v1980 = vmul.f32 %v1902, %v1934
      %v1981 = vmul.f32 %v1904, %v1936
      %v1982 = vmul.f32 %v1906, %v1938
      %v1983 = vmul.f32 %v1908, %v1940
      %v1984 = vmul.f32 %v1910, %v1942
      %v1985 = vmul.f32 %v1912, %v1944
      %v1986 = vmul.f32 %v1914, %v1946
      %v1987 = vmul.f32 %v1916, %v1948
      %v1988 = vmul.f32 %v1918, %v1950
      %v1989 = vmul.f32 %v1920, %v1952
      %v1990 = vmul.f32 %v1922, %v1954
      %v1991 = vmul.f32 %v1924, %v1956
      %v1992 = vmul.f32 %v1926, %v1958
      %v1993 = vmul.f32 %v1928, %v1960
      %v1994 = vmul.f32 %v1930, %v1962
      %1996 = vset.pattern.permute.xlu0 1
      %1997 = vperm.xlu0 %1996, %v1979
      %v1998 = vpop.permute.xlu0 %1997
      %2001 = vset.pattern.permute.xlu0 1
      %2002 = vperm.xlu0 %2001, %v1980
      %v2003 = vpop.permute.xlu0 %2002
      %2006 = vset.pattern.permute.xlu0 1
      %2007 = vperm.xlu0 %2006, %v1981
      %v2008 = vpop.permute.xlu0 %2007
      %2011 = vset.pattern.permute.xlu0 1
      %2012 = vperm.xlu0 %2011, %v1982
      %v2013 = vpop.permute.xlu0 %2012
      %2016 = vset.pattern.permute.xlu0 1
      %2017 = vperm.xlu0 %2016, %v1983
      %v2018 = vpop.permute.xlu0 %2017
      %2021 = vset.pattern.permute.xlu0 1
      %2022 = vperm.xlu0 %2021, %v1984
      %v2023 = vpop.permute.xlu0 %2022
      %2026 = vset.pattern.permute.xlu0 1
      %2027 = vperm.xlu0 %2026, %v1985
      %v2028 = vpop.permute.xlu0 %2027
      %2031 = vset.pattern.permute.xlu0 1
      %2032 = vperm.xlu0 %2031, %v1986
      %v2033 = vpop.permute.xlu0 %2032
      %2036 = vset.pattern.permute.xlu0 1
      %2037 = vperm.xlu0 %2036, %v1987
      %v2038 = vpop.permute.xlu0 %2037
      %2041 = vset.pattern.permute.xlu0 1
      %2042 = vperm.xlu0 %2041, %v1988
      %v2043 = vpop.permute.xlu0 %2042
      %2046 = vset.pattern.permute.xlu0 1
      %2047 = vperm.xlu0 %2046, %v1989
      %v2048 = vpop.permute.xlu0 %2047
      %2051 = vset.pattern.permute.xlu0 1
      %2052 = vperm.xlu0 %2051, %v1990
      %v2053 = vpop.permute.xlu0 %2052
      %2056 = vset.pattern.permute.xlu0 1
      %2057 = vperm.xlu0 %2056, %v1991
      %v2058 = vpop.permute.xlu0 %2057
      %2061 = vset.pattern.permute.xlu0 1
      %2062 = vperm.xlu0 %2061, %v1992
      %v2063 = vpop.permute.xlu0 %2062
      %2066 = vset.pattern.permute.xlu0 1
      %2067 = vperm.xlu0 %2066, %v1993
      %v2068 = vpop.permute.xlu0 %2067
      %2071 = vset.pattern.permute.xlu0 1
      %2072 = vperm.xlu0 %2071, %v1994
      %v2073 = vpop.permute.xlu0 %2072
      %v2075 = vmul.f32 %v885, %v1998
      %v2076 = vmul.f32 %v888, %v2003
      %v2077 = vmul.f32 %v893, %v2008
      %v2078 = vmul.f32 %v896, %v2013
      %v2079 = vmul.f32 %v901, %v2018
      %v2080 = vmul.f32 %v904, %v2023
      %v2081 = vmul.f32 %v909, %v2028
      %v2082 = vmul.f32 %v912, %v2033
      %v2083 = vmul.f32 %v917, %v2038
      %v2084 = vmul.f32 %v920, %v2043
      %v2085 = vmul.f32 %v925, %v2048
      %v2086 = vmul.f32 %v928, %v2053
      %v2087 = vmul.f32 %v933, %v2058
      %v2088 = vmul.f32 %v936, %v2063
      %v2089 = vmul.f32 %v941, %v2068
      %v2090 = vmul.f32 %v944, %v2073
      %vm2091 = vcmask 392320
      %v2092 = vsel %vm2091, %v2075, 0.0
      %v2093 = vrot.slane %v2092, 4
      %v2094 = vadd.f32 %v2092, %v2093
      %v2095 = vrot.slane %v2094, 2
      %v2096 = vadd.f32 %v2094, %v2095
      %v2097 = vrot.slane %v2096, 1
      %v2098 = vadd.f32 %v2096, %v2097
      %v2099 = vsel %vm2091, %v2076, 0.0
      %v2100 = vrot.slane %v2099, 4
      %v2101 = vadd.f32 %v2099, %v2100
      %v2102 = vrot.slane %v2101, 2
      %v2103 = vadd.f32 %v2101, %v2102
      %v2104 = vrot.slane %v2103, 1
      %v2105 = vadd.f32 %v2103, %v2104
      %v2106 = vsel %vm2091, %v2077, 0.0
      %v2107 = vrot.slane %v2106, 4
      %v2108 = vadd.f32 %v2106, %v2107
      %v2109 = vrot.slane %v2108, 2
      %v2110 = vadd.f32 %v2108, %v2109
      %v2111 = vrot.slane %v2110, 1
      %v2112 = vadd.f32 %v2110, %v2111
      %v2113 = vsel %vm2091, %v2078, 0.0
      %v2114 = vrot.slane %v2113, 4
      %v2115 = vadd.f32 %v2113, %v2114
      %v2116 = vrot.slane %v2115, 2
      %v2117 = vadd.f32 %v2115, %v2116
      %v2118 = vrot.slane %v2117, 1
      %v2119 = vadd.f32 %v2117, %v2118
      %v2120 = vsel %vm2091, %v2079, 0.0
      %v2121 = vrot.slane %v2120, 4
      %v2122 = vadd.f32 %v2120, %v2121
      %v2123 = vrot.slane %v2122, 2
      %v2124 = vadd.f32 %v2122, %v2123
      %v2125 = vrot.slane %v2124, 1
      %v2126 = vadd.f32 %v2124, %v2125
      %v2127 = vsel %vm2091, %v2080, 0.0
      %v2128 = vrot.slane %v2127, 4
      %v2129 = vadd.f32 %v2127, %v2128
      %v2130 = vrot.slane %v2129, 2
      %v2131 = vadd.f32 %v2129, %v2130
      %v2132 = vrot.slane %v2131, 1
      %v2133 = vadd.f32 %v2131, %v2132
      %v2134 = vsel %vm2091, %v2081, 0.0
      %v2135 = vrot.slane %v2134, 4
      %v2136 = vadd.f32 %v2134, %v2135
      %v2137 = vrot.slane %v2136, 2
      %v2138 = vadd.f32 %v2136, %v2137
      %v2139 = vrot.slane %v2138, 1
      %v2140 = vadd.f32 %v2138, %v2139
      %v2141 = vsel %vm2091, %v2082, 0.0
      %v2142 = vrot.slane %v2141, 4
      %v2143 = vadd.f32 %v2141, %v2142
      %v2144 = vrot.slane %v2143, 2
      %v2145 = vadd.f32 %v2143, %v2144
      %v2146 = vrot.slane %v2145, 1
      %v2147 = vadd.f32 %v2145, %v2146
      %v2148 = vsel %vm2091, %v2083, 0.0
      %v2149 = vrot.slane %v2148, 4
      %v2150 = vadd.f32 %v2148, %v2149
      %v2151 = vrot.slane %v2150, 2
      %v2152 = vadd.f32 %v2150, %v2151
      %v2153 = vrot.slane %v2152, 1
      %v2154 = vadd.f32 %v2152, %v2153
      %v2155 = vsel %vm2091, %v2084, 0.0
      %v2156 = vrot.slane %v2155, 4
      %v2157 = vadd.f32 %v2155, %v2156
      %v2158 = vrot.slane %v2157, 2
      %v2159 = vadd.f32 %v2157, %v2158
      %v2160 = vrot.slane %v2159, 1
      %v2161 = vadd.f32 %v2159, %v2160
      %v2162 = vsel %vm2091, %v2085, 0.0
      %v2163 = vrot.slane %v2162, 4
      %v2164 = vadd.f32 %v2162, %v2163
      %v2165 = vrot.slane %v2164, 2
      %v2166 = vadd.f32 %v2164, %v2165
      %v2167 = vrot.slane %v2166, 1
      %v2168 = vadd.f32 %v2166, %v2167
      %v2169 = vsel %vm2091, %v2086, 0.0
      %v2170 = vrot.slane %v2169, 4
      %v2171 = vadd.f32 %v2169, %v2170
      %v2172 = vrot.slane %v2171, 2
      %v2173 = vadd.f32 %v2171, %v2172
      %v2174 = vrot.slane %v2173, 1
      %v2175 = vadd.f32 %v2173, %v2174
      %v2176 = vsel %vm2091, %v2087, 0.0
      %v2177 = vrot.slane %v2176, 4
      %v2178 = vadd.f32 %v2176, %v2177
      %v2179 = vrot.slane %v2178, 2
      %v2180 = vadd.f32 %v2178, %v2179
      %v2181 = vrot.slane %v2180, 1
      %v2182 = vadd.f32 %v2180, %v2181
      %v2183 = vsel %vm2091, %v2088, 0.0
      %v2184 = vrot.slane %v2183, 4
      %v2185 = vadd.f32 %v2183, %v2184
      %v2186 = vrot.slane %v2185, 2
      %v2187 = vadd.f32 %v2185, %v2186
      %v2188 = vrot.slane %v2187, 1
      %v2189 = vadd.f32 %v2187, %v2188
      %v2190 = vsel %vm2091, %v2089, 0.0
      %v2191 = vrot.slane %v2190, 4
      %v2192 = vadd.f32 %v2190, %v2191
      %v2193 = vrot.slane %v2192, 2
      %v2194 = vadd.f32 %v2192, %v2193
      %v2195 = vrot.slane %v2194, 1
      %v2196 = vadd.f32 %v2194, %v2195
      %v2197 = vsel %vm2091, %v2090, 0.0
      %v2198 = vrot.slane %v2197, 4
      %v2199 = vadd.f32 %v2197, %v2198
      %v2200 = vrot.slane %v2199, 2
      %v2201 = vadd.f32 %v2199, %v2200
      %v2202 = vrot.slane %v2201, 1
      %v2203 = vadd.f32 %v2201, %v2202
      %vm2220 = vcmask 1041409
      %v2221 = vsel %vm2220, %v2105, %v2098
      %vm2222 = vcmask 1042434
      %v2223 = vsel %vm2222, %v2112, %v2221
      %vm2224 = vcmask 1043459
      %v2225 = vsel %vm2224, %v2119, %v2223
      %vm2226 = vcmask 1044484
      %v2227 = vsel %vm2226, %v2126, %v2225
      %vm2228 = vcmask 1045509
      %v2229 = vsel %vm2228, %v2133, %v2227
      %vm2230 = vcmask 1046534
      %v2231 = vsel %vm2230, %v2140, %v2229
      %vm2232 = vcmask 1047559
      %v2233 = vsel %vm2232, %v2147, %v2231
      %v2234 = vsel %vm2220, %v2161, %v2154
      %v2235 = vsel %vm2222, %v2168, %v2234
      %v2236 = vsel %vm2224, %v2175, %v2235
      %v2237 = vsel %vm2226, %v2182, %v2236
      %v2238 = vsel %vm2228, %v2189, %v2237
      %v2239 = vsel %vm2230, %v2196, %v2238
      %v2240 = vsel %vm2232, %v2203, %v2239
      %2241 = vrot.lane.b32.xlu0 %v2233, 112
      %v2242 = vpop.permute.xlu0 %2241
      %2243 = vrot.lane.b32.xlu0 %v2240, 112
      %v2244 = vpop.permute.xlu0 %2243
      %2247 = vst.msk [vmem:[%s446] sm:$0xff] %vm1263, %v2242
      %2248 = vst.msk [vmem:[%s446 + $0x8] sm:$0xff] %vm1263, %v2244
      %v2251 = vrot.slane %v1004, 1
      %v2252 = vrot.slane %v1004, 2
      %v2253 = vrot.slane %v1004, 3
      %v2254 = vrot.slane %v1004, 4
      %v2255 = vrot.slane %v1004, 5
      %v2256 = vrot.slane %v1004, 6
      %v2257 = vrot.slane %v1004, 7
      %v2258 = vrot.slane %v1007, 1
      %v2259 = vrot.slane %v1007, 2
      %v2260 = vrot.slane %v1007, 3
      %v2261 = vrot.slane %v1007, 4
      %v2262 = vrot.slane %v1007, 5
      %v2263 = vrot.slane %v1007, 6
      %v2264 = vrot.slane %v1007, 7
      %2265 = vrot.lane.b32.xlu0 %v1004, 16
      %v2266 = vpop.permute.xlu0 %2265
      %2267 = vrot.lane.b32.xlu0 %v2251, 16
      %v2268 = vpop.permute.xlu0 %2267
      %2269 = vrot.lane.b32.xlu0 %v2252, 16
      %v2270 = vpop.permute.xlu0 %2269
      %2271 = vrot.lane.b32.xlu0 %v2253, 16
      %v2272 = vpop.permute.xlu0 %2271
      %2273 = vrot.lane.b32.xlu0 %v2254, 16
      %v2274 = vpop.permute.xlu0 %2273
      %2275 = vrot.lane.b32.xlu0 %v2255, 16
      %v2276 = vpop.permute.xlu0 %2275
      %2277 = vrot.lane.b32.xlu0 %v2256, 16
      %v2278 = vpop.permute.xlu0 %2277
      %2279 = vrot.lane.b32.xlu0 %v2257, 16
      %v2280 = vpop.permute.xlu0 %2279
      %2281 = vrot.lane.b32.xlu0 %v1007, 16
      %v2282 = vpop.permute.xlu0 %2281
      %2283 = vrot.lane.b32.xlu0 %v2258, 16
      %v2284 = vpop.permute.xlu0 %2283
      %2285 = vrot.lane.b32.xlu0 %v2259, 16
      %v2286 = vpop.permute.xlu0 %2285
      %2287 = vrot.lane.b32.xlu0 %v2260, 16
      %v2288 = vpop.permute.xlu0 %2287
      %2289 = vrot.lane.b32.xlu0 %v2261, 16
      %v2290 = vpop.permute.xlu0 %2289
      %2291 = vrot.lane.b32.xlu0 %v2262, 16
      %v2292 = vpop.permute.xlu0 %2291
      %2293 = vrot.lane.b32.xlu0 %v2263, 16
      %v2294 = vpop.permute.xlu0 %2293
      %2295 = vrot.lane.b32.xlu0 %v2264, 16
      %v2296 = vpop.permute.xlu0 %2295
      %v2313 = vadd.f32 %v2098, %v2266
      %v2314 = vadd.f32 %v2105, %v2268
      %v2315 = vadd.f32 %v2112, %v2270
      %v2316 = vadd.f32 %v2119, %v2272
      %v2317 = vadd.f32 %v2126, %v2274
      %v2318 = vadd.f32 %v2133, %v2276
      %v2319 = vadd.f32 %v2140, %v2278
      %v2320 = vadd.f32 %v2147, %v2280
      %v2321 = vadd.f32 %v2154, %v2282
      %v2322 = vadd.f32 %v2161, %v2284
      %v2323 = vadd.f32 %v2168, %v2286
      %v2324 = vadd.f32 %v2175, %v2288
      %v2325 = vadd.f32 %v2182, %v2290
      %v2326 = vadd.f32 %v2189, %v2292
      %v2327 = vadd.f32 %v2196, %v2294
      %v2328 = vadd.f32 %v2203, %v2296
      %v2329 = vld [vmem:[%s9] sm:$0x1]
      %v2331 = vlaneseq
      %v2332 = vshrl.u32 %v2331, 7
      %v2333 = vsub.s32 0, %v2332
      %v2334 = vrot.slane %v2329, %v2333
      %2335 = vrot.lane.b32.xlu0 %v2334, 32
      %v2336 = vpop.permute.xlu0 %2335
      %v2338 = vadd.f32 %v2313, %v2336
      %v2339 = vadd.f32 %v2314, %v2336
      %v2340 = vadd.f32 %v2315, %v2336
      %v2341 = vadd.f32 %v2316, %v2336
      %v2342 = vadd.f32 %v2317, %v2336
      %v2343 = vadd.f32 %v2318, %v2336
      %v2344 = vadd.f32 %v2319, %v2336
      %v2345 = vadd.f32 %v2320, %v2336
      %v2346 = vadd.f32 %v2321, %v2336
      %v2347 = vadd.f32 %v2322, %v2336
      %v2348 = vadd.f32 %v2323, %v2336
      %v2349 = vadd.f32 %v2324, %v2336
      %v2350 = vadd.f32 %v2325, %v2336
      %v2351 = vadd.f32 %v2326, %v2336
      %v2352 = vadd.f32 %v2327, %v2336
      %v2353 = vadd.f32 %v2328, %v2336
      %v2370 = vrot.slane %v2339, 7
      %v2371 = vsel %vm2220, %v2370, %v2338
      %v2372 = vrot.slane %v2340, 6
      %v2373 = vsel %vm2222, %v2372, %v2371
      %v2374 = vrot.slane %v2341, 5
      %v2375 = vsel %vm2224, %v2374, %v2373
      %v2376 = vrot.slane %v2342, 4
      %v2377 = vsel %vm2226, %v2376, %v2375
      %v2378 = vrot.slane %v2343, 3
      %v2379 = vsel %vm2228, %v2378, %v2377
      %v2380 = vrot.slane %v2344, 2
      %v2381 = vsel %vm2230, %v2380, %v2379
      %v2382 = vrot.slane %v2345, 1
      %v2383 = vsel %vm2232, %v2382, %v2381
      %v2384 = vrot.slane %v2347, 7
      %v2385 = vsel %vm2220, %v2384, %v2346
      %v2386 = vrot.slane %v2348, 6
      %v2387 = vsel %vm2222, %v2386, %v2385
      %v2388 = vrot.slane %v2349, 5
      %v2389 = vsel %vm2224, %v2388, %v2387
      %v2390 = vrot.slane %v2350, 4
      %v2391 = vsel %vm2226, %v2390, %v2389
      %v2392 = vrot.slane %v2351, 3
      %v2393 = vsel %vm2228, %v2392, %v2391
      %v2394 = vrot.slane %v2352, 2
      %v2395 = vsel %vm2230, %v2394, %v2393
      %v2396 = vrot.slane %v2353, 1
      %v2397 = vsel %vm2232, %v2396, %v2395
      %2398 = vrot.lane.b32.xlu0 %v2383, 112
      %v2399 = vpop.permute.xlu0 %2398
      %2400 = vrot.lane.b32.xlu0 %v2397, 112
      %v2401 = vpop.permute.xlu0 %2400
      %vm2404 = vcmask 261248
      %2405 = vst.msk [vmem:[%s446] sm:$0xff] %vm2404, %v2399
      %2406 = vst.msk [vmem:[%s446 + $0x8] sm:$0xff] %vm2404, %v2401
      %s2407 = smul.u32 16, %s23
      %p2408 = scmp.lt.s32.totalorder %s2407, 31
      %s2409 = scalar_select %p2408, %s2407, 31
      %s2410 = smul.addr %s2409, 8
      %s2411 = scalar_lea.vmem %s10, %s2410
      %s2412 = smul.u32 2, %s23
      %p2413 = scmp.lt.s32.totalorder %s2412, 3
      %s2414 = scalar_select %p2413, %s2412, 3
      %s2415 = smul.addr %s2414, 8
      %s2416 = scalar_lea.vmem %s11, %s2415
      // Predicated region
      $region61: #{attn_readout.1} parent=59 // pred_check
        %p2417 = pneg %p266
      $region62: #{attn_readout.1} parent=59 // pred_check_branch
        %2419 = sbr.rel (%p2417) target = $region64
      $region63: #{attn_readout.1} parent=59 // pred_region
        %s2420 = smul.u32 16, %s23
      $region64: #{attn_readout.1} parent=59 // pred_fallthru
        _
      // Predicated region
      $region65: #{attn_readout.1} parent=59 // pred_check
        %p2421 = pneg %p292
      $region66: #{attn_readout.1} parent=59 // pred_check_branch
        %2423 = sbr.rel (%p2421) target = $region68
      $region67: #{attn_readout.1} parent=59 // pred_region
        %s2424 = smul.u32 2, %s23
      $region68: #{attn_readout.1} parent=59 // pred_fallthru
        _
    $region60: #{attn_readout.1} parent=5 // pred_fallthru
      _
    %p2425 = scmp.le.s32.totalorder 2, %s18
    // Predicated region
    $region69: #{attn_readout.1} parent=5 // pred_check
      %p2426 = pneg %p2425
    $region70: #{attn_readout.1} parent=5 // pred_check_branch
      %2428 = sbr.rel (%p2426) target = $region72
    $region71: #{attn_readout.1} parent=5 // pred_region
      %s2429 = ssub.s32 %s18, 2
      // Predicated region
      $region73: #{attn_readout.1} parent=71 // pred_check
        %p2430 = pneg %p272
      $region74: #{attn_readout.1} parent=71 // pred_check_branch
        %2432 = sbr.rel (%p2430) target = $region76
      $region75: #{attn_readout.1} parent=71 // pred_region
        %s2433 = smul.u32 16, %s24
        %p2434 = scmp.lt.s32.totalorder %s2433, 31
        %s2435 = scalar_select %p2434, %s2433, 31
        %s2436 = smul.addr %s2435, 8
        %s2437 = scalar_lea.vmem %s10, %s2436
      $region76: #{attn_readout.1} parent=71 // pred_fallthru
        _
      // Predicated region
      $region77: #{attn_readout.1} parent=71 // pred_check
        %p2438 = pneg %p298
      $region78: #{attn_readout.1} parent=71 // pred_check_branch
        %2440 = sbr.rel (%p2438) target = $region80
      $region79: #{attn_readout.1} parent=71 // pred_region
        %s2441 = smul.u32 2, %s24
        %p2442 = scmp.lt.s32.totalorder %s2441, 3
        %s2443 = scalar_select %p2442, %s2441, 3
        %s2444 = smul.addr %s2443, 8
        %s2445 = scalar_lea.vmem %s11, %s2444
      $region80: #{attn_readout.1} parent=71 // pred_fallthru
        _
    $region72: #{attn_readout.1} parent=5 // pred_fallthru
      _
  $region6: #{attn_readout.1} parent=0 // loop_footer
    %s22 = sadd.s32 1, %s18
  $region7: #{attn_readout.1} parent=0 // loop_footer_branch
    %17 = sbr.rel target = $region3
  $region8: #{attn_readout.1} parent=0 // loop_exit
    _

</llo_original>
